<compile_context>
chip_gen: v7x
topology: tpu7x:2x2x1
jax: 0.10.0
libtpu: 0.0.40
codegen_flags: <defaults>
</compile_context>

<pallas_src>
import jax
import jax.numpy as jnp
import numpy as np
from jax.experimental import pallas as pl
from jax.experimental.pallas import tpu as pltpu

INPUT_DIM = 1
HIDDEN = 64
FC1 = 128
OUTPUT_DIM = 1


def stock_predictor_kernel(xproj_ref,   # (S, 4H)  precomputed x_row * w_ih0.T + (b_ih0 + b_hh0)
                           w_hh0_ref,   # (H, 4H)  layer-0 recurrent weights (transposed)
                           w_l1_ref,    # (2H, 4H) stacked [w_ih_l1.T ; w_hh_l1.T]
                           b1_ref,      # (1, 4H)  b_ih_l1 + b_hh_l1
                           fc1_w_ref,   # (H, 128)
                           fc1_b_ref,   # (1, 128)
                           fc2_w_ref,   # (1, 128) fc2 weight as a row
                           fc2_b_ref,   # (1, 1)
                           out_ref,     # (S, 1)
                           seq_out):    # (S, H) VMEM scratch for layer-1 hidden states
    S = xproj_ref.shape[0]
    H = seq_out.shape[1]

    w_hh0 = w_hh0_ref[...]
    w_l1 = w_l1_ref[...]
    b1 = b1_ref[...]

    def cell(gates, c_prev):
        # PyTorch gate order: i, f, g, o.  i/f are adjacent -> one 128-lane sigmoid.
        i_f = jax.nn.sigmoid(gates[:, 0:2 * H])
        i = i_f[:, 0:H]
        f = i_f[:, H:2 * H]
        g = jnp.tanh(gates[:, 2 * H:3 * H])
        o = jax.nn.sigmoid(gates[:, 3 * H:4 * H])
        c_new = f * c_prev + i * g
        h_new = o * jnp.tanh(c_new)
        return h_new, c_new

    zero = jnp.zeros((1, H), jnp.float32)
    h1, c1, h2, c2 = zero, zero, zero, zero

    # Static unrolled recurrence (S is a small compile-time constant).
    for t in range(S):
        # layer 0: input projection + biases already folded into xproj
        gates1 = xproj_ref[t:t + 1, :] + jnp.dot(
            h1, w_hh0, preferred_element_type=jnp.float32)
        h1, c1 = cell(gates1, c1)

        # layer 1: single fused K=2H matmul over [h1, h2]
        hcat = jnp.concatenate([h1, h2], axis=1)                  # (1, 2H)
        gates2 = jnp.dot(hcat, w_l1,
                         preferred_element_type=jnp.float32) + b1
        h2, c2 = cell(gates2, c2)

        seq_out[t:t + 1, :] = h2                                  # static-offset store

    # head: relu -> fc1 -> relu -> fc2 (fc2 as VPU multiply + lane reduction)
    y = jnp.maximum(seq_out[...], 0.0)                                       # (S, H)
    y = jnp.maximum(
        jnp.dot(y, fc1_w_ref[...], preferred_element_type=jnp.float32)
        + fc1_b_ref[...], 0.0)                                               # (S, 128)
    out_ref[...] = (jnp.sum(y * fc2_w_ref[...], axis=-1, keepdims=True)
                    + fc2_b_ref[...])                                        # (S, 1)


def stock_predictor_forward(x, p):
    S, B, _ = x.shape
    H = HIDDEN

    # Only batch row B-1 is consumed by the head (out[:, -1, :]); rows are independent.
    x_row = x[:, B - 1, :].astype(jnp.float32)                    # (S, 1)
    b0 = (p['b_ih_l0'] + p['b_hh_l0']).reshape(1, 4 * H)
    xproj = x_row * p['w_ih_l0'].T + b0                           # (S, 4H)

    w_l1 = jnp.concatenate([p['w_ih_l1'].T, p['w_hh_l1'].T], axis=0)   # (2H, 4H)

    ins = (
        xproj,
        p['w_hh_l0'].T,                                           # (H, 4H)
        w_l1,                                                     # (2H, 4H)
        (p['b_ih_l1'] + p['b_hh_l1']).reshape(1, 4 * H),
        p['fc1_w'].T,                                             # (H, 128)
        p['fc1_b'].reshape(1, FC1),
        p['fc2_w'].reshape(1, FC1),                               # (1, 128)
        p['fc2_b'].reshape(1, OUTPUT_DIM),
    )
    return pl.pallas_call(
        stock_predictor_kernel,
        out_shape=jax.ShapeDtypeStruct((S, OUTPUT_DIM), jnp.float32),
        in_specs=[pl.BlockSpec(memory_space=pltpu.MemorySpace.VMEM)] * len(ins),
        out_specs=pl.BlockSpec(memory_space=pltpu.MemorySpace.VMEM),
        scratch_shapes=[pltpu.VMEM((S, H), jnp.float32)],
    )(*ins)


def reference_forward(x, p):
    """Pure-JAX reference reproducing PyTorch semantics exactly."""
    S, B, _ = x.shape
    H = HIDDEN
    h1 = jnp.zeros((B, H), jnp.float32)
    c1 = jnp.zeros((B, H), jnp.float32)
    h2 = jnp.zeros((B, H), jnp.float32)
    c2 = jnp.zeros((B, H), jnp.float32)

    def cell(gates, c_prev):
        i = jax.nn.sigmoid(gates[:, 0:H])
        f = jax.nn.sigmoid(gates[:, H:2 * H])
        g = jnp.tanh(gates[:, 2 * H:3 * H])
        o = jax.nn.sigmoid(gates[:, 3 * H:4 * H])
        c = f * c_prev + i * g
        return o * jnp.tanh(c), c

    outs = []
    for t in range(S):
        xt = x[t]
        g1 = xt @ p['w_ih_l0'].T + p['b_ih_l0'] + h1 @ p['w_hh_l0'].T + p['b_hh_l0']
        h1, c1 = cell(g1, c1)
        g2 = h1 @ p['w_ih_l1'].T + p['b_ih_l1'] + h2 @ p['w_hh_l1'].T + p['b_hh_l1']
        h2, c2 = cell(g2, c2)
        outs.append(h2)
    out = jnp.stack(outs, axis=0)                # (S, B, H)
    y = jax.nn.relu(out[:, -1, :])               # (S, H)
    y = jax.nn.relu(y @ p['fc1_w'].T + p['fc1_b'])
    return y @ p['fc2_w'].T + p['fc2_b']         # (S, 1)


def init_params(key):
    ks = jax.random.split(key, 12)
    k_lstm = 1.0 / np.sqrt(HIDDEN)
    k_fc1 = 1.0 / np.sqrt(HIDDEN)
    k_fc2 = 1.0 / np.sqrt(FC1)

    def u(k, shape, s):
        return jax.random.uniform(k, shape, jnp.float32, -s, s)

    return {
        'w_ih_l0': u(ks[0], (4 * HIDDEN, INPUT_DIM), k_lstm),
        'w_hh_l0': u(ks[1], (4 * HIDDEN, HIDDEN), k_lstm),
        'b_ih_l0': u(ks[2], (4 * HIDDEN,), k_lstm),
        'b_hh_l0': u(ks[3], (4 * HIDDEN,), k_lstm),
        'w_ih_l1': u(ks[4], (4 * HIDDEN, HIDDEN), k_lstm),
        'w_hh_l1': u(ks[5], (4 * HIDDEN, HIDDEN), k_lstm),
        'b_ih_l1': u(ks[6], (4 * HIDDEN,), k_lstm),
        'b_hh_l1': u(ks[7], (4 * HIDDEN,), k_lstm),
        'fc1_w': u(ks[8], (FC1, HIDDEN), k_fc1),
        'fc1_b': u(ks[9], (FC1,), k_fc1),
        'fc2_w': u(ks[10], (OUTPUT_DIM, FC1), k_fc2),
        'fc2_b': u(ks[11], (OUTPUT_DIM,), k_fc2),
    }


if __name__ == "__main__":
    key = jax.random.PRNGKey(0)
    k_p, k_x = jax.random.split(key)
    params = init_params(k_p)

    # seq == batch == 8 (required for the original PyTorch forward to run at all)
    S = B = 8
    x = jax.random.normal(k_x, (S, B, INPUT_DIM), jnp.float32)

    out = stock_predictor_forward(x, params)
    out = jax.block_until_ready(out)

    ref = reference_forward(x, params)
    assert out.shape == (S, OUTPUT_DIM)
    np.testing.assert_allclose(np.asarray(out), np.asarray(ref), rtol=1e-4, atol=1e-5)

    print("KERNEL_OK")
</pallas_src>

<mosaic_0001>
module attributes {stable_mosaic.version = 11 : i64} {
  func.func @stock_predictor_kernel(%arg0: memref<8x256xf32, #tpu.memory_space<vmem>>, %arg1: memref<64x256xf32, #tpu.memory_space<vmem>>, %arg2: memref<128x256xf32, #tpu.memory_space<vmem>>, %arg3: memref<1x256xf32, #tpu.memory_space<vmem>>, %arg4: memref<64x128xf32, #tpu.memory_space<vmem>>, %arg5: memref<1x128xf32, #tpu.memory_space<vmem>>, %arg6: memref<1x128xf32, #tpu.memory_space<vmem>>, %arg7: memref<1x1xf32, #tpu.memory_space<vmem>>, %arg8: memref<8x1xf32, #tpu.memory_space<vmem>>, %arg9: memref<8x64xf32, #tpu.memory_space<vmem>>) attributes {dimension_semantics = [], scalar_prefetch = 0 : i64, scratch_operands = 1 : i64, tpu.core_type = #tpu.core_type<tc>} {
    %c0 = arith.constant 0 : index
    %c0_0 = arith.constant 0 : index
    %0 = vector.load %arg1[%c0, %c0_0] : memref<64x256xf32, #tpu.memory_space<vmem>>, vector<64x256xf32>
    %c0_1 = arith.constant 0 : index
    %c0_2 = arith.constant 0 : index
    %1 = vector.load %arg2[%c0_1, %c0_2] : memref<128x256xf32, #tpu.memory_space<vmem>>, vector<128x256xf32>
    %c0_3 = arith.constant 0 : index
    %c0_4 = arith.constant 0 : index
    %2 = vector.load %arg3[%c0_3, %c0_4] : memref<1x256xf32, #tpu.memory_space<vmem>>, vector<1x256xf32>
    %cst = arith.constant 0.000000e+00 : f32
    %3 = vector.broadcast %cst : f32 to vector<1x64xf32>
    %c0_5 = arith.constant 0 : index
    %c0_6 = arith.constant 0 : index
    %4 = vector.load %arg0[%c0_5, %c0_6] : memref<8x256xf32, #tpu.memory_space<vmem>>, vector<1x256xf32>
    %cst_7 = arith.constant dense<0.000000e+00> : vector<1x256xf32>
    %5 = tpu.matmul %3, %0, %cst_7 {dimension_numbers = #tpu.dot_dimension_numbers<[1], [0], [0], [1], [0, 0, 1, 1], [], []>} : vector<1x64xf32>, vector<64x256xf32>, vector<1x256xf32> -> vector<1x256xf32>
    %6 = arith.addf %4, %5 : vector<1x256xf32>
    %7 = vector.extract_strided_slice %6 {offsets = [0, 0], sizes = [1, 128], strides = [1, 1]} : vector<1x256xf32> to vector<1x128xf32>
    %8 = arith.negf %7 : vector<1x128xf32>
    %9 = math.exp %8 : vector<1x128xf32>
    %cst_8 = arith.constant 1.000000e+00 : f32
    %10 = vector.broadcast %cst_8 : f32 to vector<1x128xf32>
    %11 = arith.addf %10, %9 : vector<1x128xf32>
    %12 = arith.divf %10, %11 : vector<1x128xf32>
    %13 = vector.extract_strided_slice %12 {offsets = [0, 0], sizes = [1, 64], strides = [1, 1]} : vector<1x128xf32> to vector<1x64xf32>
    %14 = vector.extract_strided_slice %12 {offsets = [0, 64], sizes = [1, 64], strides = [1, 1]} : vector<1x128xf32> to vector<1x64xf32>
    %15 = vector.extract_strided_slice %6 {offsets = [0, 128], sizes = [1, 64], strides = [1, 1]} : vector<1x256xf32> to vector<1x64xf32>
    %16 = math.tanh %15 : vector<1x64xf32>
    %17 = vector.extract_strided_slice %6 {offsets = [0, 192], sizes = [1, 64], strides = [1, 1]} : vector<1x256xf32> to vector<1x64xf32>
    %18 = arith.negf %17 : vector<1x64xf32>
    %19 = math.exp %18 : vector<1x64xf32>
    %cst_9 = arith.constant 1.000000e+00 : f32
    %20 = vector.broadcast %cst_9 : f32 to vector<1x64xf32>
    %21 = arith.addf %20, %19 : vector<1x64xf32>
    %22 = arith.divf %20, %21 : vector<1x64xf32>
    %23 = arith.mulf %14, %3 : vector<1x64xf32>
    %24 = arith.mulf %13, %16 : vector<1x64xf32>
    %25 = arith.addf %23, %24 : vector<1x64xf32>
    %26 = math.tanh %25 : vector<1x64xf32>
    %27 = arith.mulf %22, %26 : vector<1x64xf32>
    %28 = tpu.concatenate %27, %3 in 1 : vector<1x64xf32>, vector<1x64xf32> -> vector<1x128xf32>
    %cst_10 = arith.constant dense<0.000000e+00> : vector<1x256xf32>
    %29 = tpu.matmul %28, %1, %cst_10 {dimension_numbers = #tpu.dot_dimension_numbers<[1], [0], [0], [1], [0, 0, 1, 1], [], []>} : vector<1x128xf32>, vector<128x256xf32>, vector<1x256xf32> -> vector<1x256xf32>
    %30 = arith.addf %29, %2 : vector<1x256xf32>
    %31 = vector.extract_strided_slice %30 {offsets = [0, 0], sizes = [1, 128], strides = [1, 1]} : vector<1x256xf32> to vector<1x128xf32>
    %32 = arith.negf %31 : vector<1x128xf32>
    %33 = math.exp %32 : vector<1x128xf32>
    %cst_11 = arith.constant 1.000000e+00 : f32
    %34 = vector.broadcast %cst_11 : f32 to vector<1x128xf32>
    %35 = arith.addf %34, %33 : vector<1x128xf32>
    %36 = arith.divf %34, %35 : vector<1x128xf32>
    %37 = vector.extract_strided_slice %36 {offsets = [0, 0], sizes = [1, 64], strides = [1, 1]} : vector<1x128xf32> to vector<1x64xf32>
    %38 = vector.extract_strided_slice %36 {offsets = [0, 64], sizes = [1, 64], strides = [1, 1]} : vector<1x128xf32> to vector<1x64xf32>
    %39 = vector.extract_strided_slice %30 {offsets = [0, 128], sizes = [1, 64], strides = [1, 1]} : vector<1x256xf32> to vector<1x64xf32>
    %40 = math.tanh %39 : vector<1x64xf32>
    %41 = vector.extract_strided_slice %30 {offsets = [0, 192], sizes = [1, 64], strides = [1, 1]} : vector<1x256xf32> to vector<1x64xf32>
    %42 = arith.negf %41 : vector<1x64xf32>
    %43 = math.exp %42 : vector<1x64xf32>
    %cst_12 = arith.constant 1.000000e+00 : f32
    %44 = vector.broadcast %cst_12 : f32 to vector<1x64xf32>
    %45 = arith.addf %44, %43 : vector<1x64xf32>
    %46 = arith.divf %44, %45 : vector<1x64xf32>
    %47 = arith.mulf %38, %3 : vector<1x64xf32>
    %48 = arith.mulf %37, %40 : vector<1x64xf32>
    %49 = arith.addf %47, %48 : vector<1x64xf32>
    %50 = math.tanh %49 : vector<1x64xf32>
    %51 = arith.mulf %46, %50 : vector<1x64xf32>
    %c0_13 = arith.constant 0 : index
    %c0_14 = arith.constant 0 : index
    %52 = vector.load %arg9[%c0_13, %c0_14] : memref<8x64xf32, #tpu.memory_space<vmem>>, vector<1x64xf32>
    tpu.vector_store %arg9[%c0_13, %c0_14], %51 {strides = array<i32>} : memref<8x64xf32, #tpu.memory_space<vmem>>, vector<1x64xf32>,
    %c1 = arith.constant 1 : index
    %c0_15 = arith.constant 0 : index
    %53 = vector.load %arg0[%c1, %c0_15] : memref<8x256xf32, #tpu.memory_space<vmem>>, vector<1x256xf32>
    %cst_16 = arith.constant dense<0.000000e+00> : vector<1x256xf32>
    %54 = tpu.matmul %27, %0, %cst_16 {dimension_numbers = #tpu.dot_dimension_numbers<[1], [0], [0], [1], [0, 0, 1, 1], [], []>} : vector<1x64xf32>, vector<64x256xf32>, vector<1x256xf32> -> vector<1x256xf32>
    %55 = arith.addf %53, %54 : vector<1x256xf32>
    %56 = vector.extract_strided_slice %55 {offsets = [0, 0], sizes = [1, 128], strides = [1, 1]} : vector<1x256xf32> to vector<1x128xf32>
    %57 = arith.negf %56 : vector<1x128xf32>
    %58 = math.exp %57 : vector<1x128xf32>
    %cst_17 = arith.constant 1.000000e+00 : f32
    %59 = vector.broadcast %cst_17 : f32 to vector<1x128xf32>
    %60 = arith.addf %59, %58 : vector<1x128xf32>
    %61 = arith.divf %59, %60 : vector<1x128xf32>
    %62 = vector.extract_strided_slice %61 {offsets = [0, 0], sizes = [1, 64], strides = [1, 1]} : vector<1x128xf32> to vector<1x64xf32>
    %63 = vector.extract_strided_slice %61 {offsets = [0, 64], sizes = [1, 64], strides = [1, 1]} : vector<1x128xf32> to vector<1x64xf32>
    %64 = vector.extract_strided_slice %55 {offsets = [0, 128], sizes = [1, 64], strides = [1, 1]} : vector<1x256xf32> to vector<1x64xf32>
    %65 = math.tanh %64 : vector<1x64xf32>
    %66 = vector.extract_strided_slice %55 {offsets = [0, 192], sizes = [1, 64], strides = [1, 1]} : vector<1x256xf32> to vector<1x64xf32>
    %67 = arith.negf %66 : vector<1x64xf32>
    %68 = math.exp %67 : vector<1x64xf32>
    %cst_18 = arith.constant 1.000000e+00 : f32
    %69 = vector.broadcast %cst_18 : f32 to vector<1x64xf32>
    %70 = arith.addf %69, %68 : vector<1x64xf32>
    %71 = arith.divf %69, %70 : vector<1x64xf32>
    %72 = arith.mulf %63, %25 : vector<1x64xf32>
    %73 = arith.mulf %62, %65 : vector<1x64xf32>
    %74 = arith.addf %72, %73 : vector<1x64xf32>
    %75 = math.tanh %74 : vector<1x64xf32>
    %76 = arith.mulf %71, %75 : vector<1x64xf32>
    %77 = tpu.concatenate %76, %51 in 1 : vector<1x64xf32>, vector<1x64xf32> -> vector<1x128xf32>
    %cst_19 = arith.constant dense<0.000000e+00> : vector<1x256xf32>
    %78 = tpu.matmul %77, %1, %cst_19 {dimension_numbers = #tpu.dot_dimension_numbers<[1], [0], [0], [1], [0, 0, 1, 1], [], []>} : vector<1x128xf32>, vector<128x256xf32>, vector<1x256xf32> -> vector<1x256xf32>
    %79 = arith.addf %78, %2 : vector<1x256xf32>
    %80 = vector.extract_strided_slice %79 {offsets = [0, 0], sizes = [1, 128], strides = [1, 1]} : vector<1x256xf32> to vector<1x128xf32>
    %81 = arith.negf %80 : vector<1x128xf32>
    %82 = math.exp %81 : vector<1x128xf32>
    %cst_20 = arith.constant 1.000000e+00 : f32
    %83 = vector.broadcast %cst_20 : f32 to vector<1x128xf32>
    %84 = arith.addf %83, %82 : vector<1x128xf32>
    %85 = arith.divf %83, %84 : vector<1x128xf32>
    %86 = vector.extract_strided_slice %85 {offsets = [0, 0], sizes = [1, 64], strides = [1, 1]} : vector<1x128xf32> to vector<1x64xf32>
    %87 = vector.extract_strided_slice %85 {offsets = [0, 64], sizes = [1, 64], strides = [1, 1]} : vector<1x128xf32> to vector<1x64xf32>
    %88 = vector.extract_strided_slice %79 {offsets = [0, 128], sizes = [1, 64], strides = [1, 1]} : vector<1x256xf32> to vector<1x64xf32>
    %89 = math.tanh %88 : vector<1x64xf32>
    %90 = vector.extract_strided_slice %79 {offsets = [0, 192], sizes = [1, 64], strides = [1, 1]} : vector<1x256xf32> to vector<1x64xf32>
    %91 = arith.negf %90 : vector<1x64xf32>
    %92 = math.exp %91 : vector<1x64xf32>
    %cst_21 = arith.constant 1.000000e+00 : f32
    %93 = vector.broadcast %cst_21 : f32 to vector<1x64xf32>
    %94 = arith.addf %93, %92 : vector<1x64xf32>
    %95 = arith.divf %93, %94 : vector<1x64xf32>
    %96 = arith.mulf %87, %49 : vector<1x64xf32>
    %97 = arith.mulf %86, %89 : vector<1x64xf32>
    %98 = arith.addf %96, %97 : vector<1x64xf32>
    %99 = math.tanh %98 : vector<1x64xf32>
    %100 = arith.mulf %95, %99 : vector<1x64xf32>
    %c1_22 = arith.constant 1 : index
    %c0_23 = arith.constant 0 : index
    %101 = vector.load %arg9[%c1_22, %c0_23] : memref<8x64xf32, #tpu.memory_space<vmem>>, vector<1x64xf32>
    tpu.vector_store %arg9[%c1_22, %c0_23], %100 {strides = array<i32>} : memref<8x64xf32, #tpu.memory_space<vmem>>, vector<1x64xf32>,
    %c2 = arith.constant 2 : index
    %c0_24 = arith.constant 0 : index
    %102 = vector.load %arg0[%c2, %c0_24] : memref<8x256xf32, #tpu.memory_space<vmem>>, vector<1x256xf32>
    %cst_25 = arith.constant dense<0.000000e+00> : vector<1x256xf32>
    %103 = tpu.matmul %76, %0, %cst_25 {dimension_numbers = #tpu.dot_dimension_numbers<[1], [0], [0], [1], [0, 0, 1, 1], [], []>} : vector<1x64xf32>, vector<64x256xf32>, vector<1x256xf32> -> vector<1x256xf32>
    %104 = arith.addf %102, %103 : vector<1x256xf32>
    %105 = vector.extract_strided_slice %104 {offsets = [0, 0], sizes = [1, 128], strides = [1, 1]} : vector<1x256xf32> to vector<1x128xf32>
    %106 = arith.negf %105 : vector<1x128xf32>
    %107 = math.exp %106 : vector<1x128xf32>
    %cst_26 = arith.constant 1.000000e+00 : f32
    %108 = vector.broadcast %cst_26 : f32 to vector<1x128xf32>
    %109 = arith.addf %108, %107 : vector<1x128xf32>
    %110 = arith.divf %108, %109 : vector<1x128xf32>
    %111 = vector.extract_strided_slice %110 {offsets = [0, 0], sizes = [1, 64], strides = [1, 1]} : vector<1x128xf32> to vector<1x64xf32>
    %112 = vector.extract_strided_slice %110 {offsets = [0, 64], sizes = [1, 64], strides = [1, 1]} : vector<1x128xf32> to vector<1x64xf32>
    %113 = vector.extract_strided_slice %104 {offsets = [0, 128], sizes = [1, 64], strides = [1, 1]} : vector<1x256xf32> to vector<1x64xf32>
    %114 = math.tanh %113 : vector<1x64xf32>
    %115 = vector.extract_strided_slice %104 {offsets = [0, 192], sizes = [1, 64], strides = [1, 1]} : vector<1x256xf32> to vector<1x64xf32>
    %116 = arith.negf %115 : vector<1x64xf32>
    %117 = math.exp %116 : vector<1x64xf32>
    %cst_27 = arith.constant 1.000000e+00 : f32
    %118 = vector.broadcast %cst_27 : f32 to vector<1x64xf32>
    %119 = arith.addf %118, %117 : vector<1x64xf32>
    %120 = arith.divf %118, %119 : vector<1x64xf32>
    %121 = arith.mulf %112, %74 : vector<1x64xf32>
    %122 = arith.mulf %111, %114 : vector<1x64xf32>
    %123 = arith.addf %121, %122 : vector<1x64xf32>
    %124 = math.tanh %123 : vector<1x64xf32>
    %125 = arith.mulf %120, %124 : vector<1x64xf32>
    %126 = tpu.concatenate %125, %100 in 1 : vector<1x64xf32>, vector<1x64xf32> -> vector<1x128xf32>
    %cst_28 = arith.constant dense<0.000000e+00> : vector<1x256xf32>
    %127 = tpu.matmul %126, %1, %cst_28 {dimension_numbers = #tpu.dot_dimension_numbers<[1], [0], [0], [1], [0, 0, 1, 1], [], []>} : vector<1x128xf32>, vector<128x256xf32>, vector<1x256xf32> -> vector<1x256xf32>
    %128 = arith.addf %127, %2 : vector<1x256xf32>
    %129 = vector.extract_strided_slice %128 {offsets = [0, 0], sizes = [1, 128], strides = [1, 1]} : vector<1x256xf32> to vector<1x128xf32>
    %130 = arith.negf %129 : vector<1x128xf32>
    %131 = math.exp %130 : vector<1x128xf32>
    %cst_29 = arith.constant 1.000000e+00 : f32
    %132 = vector.broadcast %cst_29 : f32 to vector<1x128xf32>
    %133 = arith.addf %132, %131 : vector<1x128xf32>
    %134 = arith.divf %132, %133 : vector<1x128xf32>
    %135 = vector.extract_strided_slice %134 {offsets = [0, 0], sizes = [1, 64], strides = [1, 1]} : vector<1x128xf32> to vector<1x64xf32>
    %136 = vector.extract_strided_slice %134 {offsets = [0, 64], sizes = [1, 64], strides = [1, 1]} : vector<1x128xf32> to vector<1x64xf32>
    %137 = vector.extract_strided_slice %128 {offsets = [0, 128], sizes = [1, 64], strides = [1, 1]} : vector<1x256xf32> to vector<1x64xf32>
    %138 = math.tanh %137 : vector<1x64xf32>
    %139 = vector.extract_strided_slice %128 {offsets = [0, 192], sizes = [1, 64], strides = [1, 1]} : vector<1x256xf32> to vector<1x64xf32>
    %140 = arith.negf %139 : vector<1x64xf32>
    %141 = math.exp %140 : vector<1x64xf32>
    %cst_30 = arith.constant 1.000000e+00 : f32
    %142 = vector.broadcast %cst_30 : f32 to vector<1x64xf32>
    %143 = arith.addf %142, %141 : vector<1x64xf32>
    %144 = arith.divf %142, %143 : vector<1x64xf32>
    %145 = arith.mulf %136, %98 : vector<1x64xf32>
    %146 = arith.mulf %135, %138 : vector<1x64xf32>
    %147 = arith.addf %145, %146 : vector<1x64xf32>
    %148 = math.tanh %147 : vector<1x64xf32>
    %149 = arith.mulf %144, %148 : vector<1x64xf32>
    %c2_31 = arith.constant 2 : index
    %c0_32 = arith.constant 0 : index
    %150 = vector.load %arg9[%c2_31, %c0_32] : memref<8x64xf32, #tpu.memory_space<vmem>>, vector<1x64xf32>
    tpu.vector_store %arg9[%c2_31, %c0_32], %149 {strides = array<i32>} : memref<8x64xf32, #tpu.memory_space<vmem>>, vector<1x64xf32>,
    %c3 = arith.constant 3 : index
    %c0_33 = arith.constant 0 : index
    %151 = vector.load %arg0[%c3, %c0_33] : memref<8x256xf32, #tpu.memory_space<vmem>>, vector<1x256xf32>
    %cst_34 = arith.constant dense<0.000000e+00> : vector<1x256xf32>
    %152 = tpu.matmul %125, %0, %cst_34 {dimension_numbers = #tpu.dot_dimension_numbers<[1], [0], [0], [1], [0, 0, 1, 1], [], []>} : vector<1x64xf32>, vector<64x256xf32>, vector<1x256xf32> -> vector<1x256xf32>
    %153 = arith.addf %151, %152 : vector<1x256xf32>
    %154 = vector.extract_strided_slice %153 {offsets = [0, 0], sizes = [1, 128], strides = [1, 1]} : vector<1x256xf32> to vector<1x128xf32>
    %155 = arith.negf %154 : vector<1x128xf32>
    %156 = math.exp %155 : vector<1x128xf32>
    %cst_35 = arith.constant 1.000000e+00 : f32
    %157 = vector.broadcast %cst_35 : f32 to vector<1x128xf32>
    %158 = arith.addf %157, %156 : vector<1x128xf32>
    %159 = arith.divf %157, %158 : vector<1x128xf32>
    %160 = vector.extract_strided_slice %159 {offsets = [0, 0], sizes = [1, 64], strides = [1, 1]} : vector<1x128xf32> to vector<1x64xf32>
    %161 = vector.extract_strided_slice %159 {offsets = [0, 64], sizes = [1, 64], strides = [1, 1]} : vector<1x128xf32> to vector<1x64xf32>
    %162 = vector.extract_strided_slice %153 {offsets = [0, 128], sizes = [1, 64], strides = [1, 1]} : vector<1x256xf32> to vector<1x64xf32>
    %163 = math.tanh %162 : vector<1x64xf32>
    %164 = vector.extract_strided_slice %153 {offsets = [0, 192], sizes = [1, 64], strides = [1, 1]} : vector<1x256xf32> to vector<1x64xf32>
    %165 = arith.negf %164 : vector<1x64xf32>
    %166 = math.exp %165 : vector<1x64xf32>
    %cst_36 = arith.constant 1.000000e+00 : f32
    %167 = vector.broadcast %cst_36 : f32 to vector<1x64xf32>
    %168 = arith.addf %167, %166 : vector<1x64xf32>
    %169 = arith.divf %167, %168 : vector<1x64xf32>
    %170 = arith.mulf %161, %123 : vector<1x64xf32>
    %171 = arith.mulf %160, %163 : vector<1x64xf32>
    %172 = arith.addf %170, %171 : vector<1x64xf32>
    %173 = math.tanh %172 : vector<1x64xf32>
    %174 = arith.mulf %169, %173 : vector<1x64xf32>
    %175 = tpu.concatenate %174, %149 in 1 : vector<1x64xf32>, vector<1x64xf32> -> vector<1x128xf32>
    %cst_37 = arith.constant dense<0.000000e+00> : vector<1x256xf32>
    %176 = tpu.matmul %175, %1, %cst_37 {dimension_numbers = #tpu.dot_dimension_numbers<[1], [0], [0], [1], [0, 0, 1, 1], [], []>} : vector<1x128xf32>, vector<128x256xf32>, vector<1x256xf32> -> vector<1x256xf32>
    %177 = arith.addf %176, %2 : vector<1x256xf32>
    %178 = vector.extract_strided_slice %177 {offsets = [0, 0], sizes = [1, 128], strides = [1, 1]} : vector<1x256xf32> to vector<1x128xf32>
    %179 = arith.negf %178 : vector<1x128xf32>
    %180 = math.exp %179 : vector<1x128xf32>
    %cst_38 = arith.constant 1.000000e+00 : f32
    %181 = vector.broadcast %cst_38 : f32 to vector<1x128xf32>
    %182 = arith.addf %181, %180 : vector<1x128xf32>
    %183 = arith.divf %181, %182 : vector<1x128xf32>
    %184 = vector.extract_strided_slice %183 {offsets = [0, 0], sizes = [1, 64], strides = [1, 1]} : vector<1x128xf32> to vector<1x64xf32>
    %185 = vector.extract_strided_slice %183 {offsets = [0, 64], sizes = [1, 64], strides = [1, 1]} : vector<1x128xf32> to vector<1x64xf32>
    %186 = vector.extract_strided_slice %177 {offsets = [0, 128], sizes = [1, 64], strides = [1, 1]} : vector<1x256xf32> to vector<1x64xf32>
    %187 = math.tanh %186 : vector<1x64xf32>
    %188 = vector.extract_strided_slice %177 {offsets = [0, 192], sizes = [1, 64], strides = [1, 1]} : vector<1x256xf32> to vector<1x64xf32>
    %189 = arith.negf %188 : vector<1x64xf32>
    %190 = math.exp %189 : vector<1x64xf32>
    %cst_39 = arith.constant 1.000000e+00 : f32
    %191 = vector.broadcast %cst_39 : f32 to vector<1x64xf32>
    %192 = arith.addf %191, %190 : vector<1x64xf32>
    %193 = arith.divf %191, %192 : vector<1x64xf32>
    %194 = arith.mulf %185, %147 : vector<1x64xf32>
    %195 = arith.mulf %184, %187 : vector<1x64xf32>
    %196 = arith.addf %194, %195 : vector<1x64xf32>
    %197 = math.tanh %196 : vector<1x64xf32>
    %198 = arith.mulf %193, %197 : vector<1x64xf32>
    %c3_40 = arith.constant 3 : index
    %c0_41 = arith.constant 0 : index
    %199 = vector.load %arg9[%c3_40, %c0_41] : memref<8x64xf32, #tpu.memory_space<vmem>>, vector<1x64xf32>
    tpu.vector_store %arg9[%c3_40, %c0_41], %198 {strides = array<i32>} : memref<8x64xf32, #tpu.memory_space<vmem>>, vector<1x64xf32>,
    %c4 = arith.constant 4 : index
    %c0_42 = arith.constant 0 : index
    %200 = vector.load %arg0[%c4, %c0_42] : memref<8x256xf32, #tpu.memory_space<vmem>>, vector<1x256xf32>
    %cst_43 = arith.constant dense<0.000000e+00> : vector<1x256xf32>
    %201 = tpu.matmul %174, %0, %cst_43 {dimension_numbers = #tpu.dot_dimension_numbers<[1], [0], [0], [1], [0, 0, 1, 1], [], []>} : vector<1x64xf32>, vector<64x256xf32>, vector<1x256xf32> -> vector<1x256xf32>
    %202 = arith.addf %200, %201 : vector<1x256xf32>
    %203 = vector.extract_strided_slice %202 {offsets = [0, 0], sizes = [1, 128], strides = [1, 1]} : vector<1x256xf32> to vector<1x128xf32>
    %204 = arith.negf %203 : vector<1x128xf32>
    %205 = math.exp %204 : vector<1x128xf32>
    %cst_44 = arith.constant 1.000000e+00 : f32
    %206 = vector.broadcast %cst_44 : f32 to vector<1x128xf32>
    %207 = arith.addf %206, %205 : vector<1x128xf32>
    %208 = arith.divf %206, %207 : vector<1x128xf32>
    %209 = vector.extract_strided_slice %208 {offsets = [0, 0], sizes = [1, 64], strides = [1, 1]} : vector<1x128xf32> to vector<1x64xf32>
    %210 = vector.extract_strided_slice %208 {offsets = [0, 64], sizes = [1, 64], strides = [1, 1]} : vector<1x128xf32> to vector<1x64xf32>
    %211 = vector.extract_strided_slice %202 {offsets = [0, 128], sizes = [1, 64], strides = [1, 1]} : vector<1x256xf32> to vector<1x64xf32>
    %212 = math.tanh %211 : vector<1x64xf32>
    %213 = vector.extract_strided_slice %202 {offsets = [0, 192], sizes = [1, 64], strides = [1, 1]} : vector<1x256xf32> to vector<1x64xf32>
    %214 = arith.negf %213 : vector<1x64xf32>
    %215 = math.exp %214 : vector<1x64xf32>
    %cst_45 = arith.constant 1.000000e+00 : f32
    %216 = vector.broadcast %cst_45 : f32 to vector<1x64xf32>
    %217 = arith.addf %216, %215 : vector<1x64xf32>
    %218 = arith.divf %216, %217 : vector<1x64xf32>
    %219 = arith.mulf %210, %172 : vector<1x64xf32>
    %220 = arith.mulf %209, %212 : vector<1x64xf32>
    %221 = arith.addf %219, %220 : vector<1x64xf32>
    %222 = math.tanh %221 : vector<1x64xf32>
    %223 = arith.mulf %218, %222 : vector<1x64xf32>
    %224 = tpu.concatenate %223, %198 in 1 : vector<1x64xf32>, vector<1x64xf32> -> vector<1x128xf32>
    %cst_46 = arith.constant dense<0.000000e+00> : vector<1x256xf32>
    %225 = tpu.matmul %224, %1, %cst_46 {dimension_numbers = #tpu.dot_dimension_numbers<[1], [0], [0], [1], [0, 0, 1, 1], [], []>} : vector<1x128xf32>, vector<128x256xf32>, vector<1x256xf32> -> vector<1x256xf32>
    %226 = arith.addf %225, %2 : vector<1x256xf32>
    %227 = vector.extract_strided_slice %226 {offsets = [0, 0], sizes = [1, 128], strides = [1, 1]} : vector<1x256xf32> to vector<1x128xf32>
    %228 = arith.negf %227 : vector<1x128xf32>
    %229 = math.exp %228 : vector<1x128xf32>
    %cst_47 = arith.constant 1.000000e+00 : f32
    %230 = vector.broadcast %cst_47 : f32 to vector<1x128xf32>
    %231 = arith.addf %230, %229 : vector<1x128xf32>
    %232 = arith.divf %230, %231 : vector<1x128xf32>
    %233 = vector.extract_strided_slice %232 {offsets = [0, 0], sizes = [1, 64], strides = [1, 1]} : vector<1x128xf32> to vector<1x64xf32>
    %234 = vector.extract_strided_slice %232 {offsets = [0, 64], sizes = [1, 64], strides = [1, 1]} : vector<1x128xf32> to vector<1x64xf32>
    %235 = vector.extract_strided_slice %226 {offsets = [0, 128], sizes = [1, 64], strides = [1, 1]} : vector<1x256xf32> to vector<1x64xf32>
    %236 = math.tanh %235 : vector<1x64xf32>
    %237 = vector.extract_strided_slice %226 {offsets = [0, 192], sizes = [1, 64], strides = [1, 1]} : vector<1x256xf32> to vector<1x64xf32>
    %238 = arith.negf %237 : vector<1x64xf32>
    %239 = math.exp %238 : vector<1x64xf32>
    %cst_48 = arith.constant 1.000000e+00 : f32
    %240 = vector.broadcast %cst_48 : f32 to vector<1x64xf32>
    %241 = arith.addf %240, %239 : vector<1x64xf32>
    %242 = arith.divf %240, %241 : vector<1x64xf32>
    %243 = arith.mulf %234, %196 : vector<1x64xf32>
    %244 = arith.mulf %233, %236 : vector<1x64xf32>
    %245 = arith.addf %243, %244 : vector<1x64xf32>
    %246 = math.tanh %245 : vector<1x64xf32>
    %247 = arith.mulf %242, %246 : vector<1x64xf32>
    %c4_49 = arith.constant 4 : index
    %c0_50 = arith.constant 0 : index
    %248 = vector.load %arg9[%c4_49, %c0_50] : memref<8x64xf32, #tpu.memory_space<vmem>>, vector<1x64xf32>
    tpu.vector_store %arg9[%c4_49, %c0_50], %247 {strides = array<i32>} : memref<8x64xf32, #tpu.memory_space<vmem>>, vector<1x64xf32>,
    %c5 = arith.constant 5 : index
    %c0_51 = arith.constant 0 : index
    %249 = vector.load %arg0[%c5, %c0_51] : memref<8x256xf32, #tpu.memory_space<vmem>>, vector<1x256xf32>
    %cst_52 = arith.constant dense<0.000000e+00> : vector<1x256xf32>
    %250 = tpu.matmul %223, %0, %cst_52 {dimension_numbers = #tpu.dot_dimension_numbers<[1], [0], [0], [1], [0, 0, 1, 1], [], []>} : vector<1x64xf32>, vector<64x256xf32>, vector<1x256xf32> -> vector<1x256xf32>
    %251 = arith.addf %249, %250 : vector<1x256xf32>
    %252 = vector.extract_strided_slice %251 {offsets = [0, 0], sizes = [1, 128], strides = [1, 1]} : vector<1x256xf32> to vector<1x128xf32>
    %253 = arith.negf %252 : vector<1x128xf32>
    %254 = math.exp %253 : vector<1x128xf32>
    %cst_53 = arith.constant 1.000000e+00 : f32
    %255 = vector.broadcast %cst_53 : f32 to vector<1x128xf32>
    %256 = arith.addf %255, %254 : vector<1x128xf32>
    %257 = arith.divf %255, %256 : vector<1x128xf32>
    %258 = vector.extract_strided_slice %257 {offsets = [0, 0], sizes = [1, 64], strides = [1, 1]} : vector<1x128xf32> to vector<1x64xf32>
    %259 = vector.extract_strided_slice %257 {offsets = [0, 64], sizes = [1, 64], strides = [1, 1]} : vector<1x128xf32> to vector<1x64xf32>
    %260 = vector.extract_strided_slice %251 {offsets = [0, 128], sizes = [1, 64], strides = [1, 1]} : vector<1x256xf32> to vector<1x64xf32>
    %261 = math.tanh %260 : vector<1x64xf32>
    %262 = vector.extract_strided_slice %251 {offsets = [0, 192], sizes = [1, 64], strides = [1, 1]} : vector<1x256xf32> to vector<1x64xf32>
    %263 = arith.negf %262 : vector<1x64xf32>
    %264 = math.exp %263 : vector<1x64xf32>
    %cst_54 = arith.constant 1.000000e+00 : f32
    %265 = vector.broadcast %cst_54 : f32 to vector<1x64xf32>
    %266 = arith.addf %265, %264 : vector<1x64xf32>
    %267 = arith.divf %265, %266 : vector<1x64xf32>
    %268 = arith.mulf %259, %221 : vector<1x64xf32>
    %269 = arith.mulf %258, %261 : vector<1x64xf32>
    %270 = arith.addf %268, %269 : vector<1x64xf32>
    %271 = math.tanh %270 : vector<1x64xf32>
    %272 = arith.mulf %267, %271 : vector<1x64xf32>
    %273 = tpu.concatenate %272, %247 in 1 : vector<1x64xf32>, vector<1x64xf32> -> vector<1x128xf32>
    %cst_55 = arith.constant dense<0.000000e+00> : vector<1x256xf32>
    %274 = tpu.matmul %273, %1, %cst_55 {dimension_numbers = #tpu.dot_dimension_numbers<[1], [0], [0], [1], [0, 0, 1, 1], [], []>} : vector<1x128xf32>, vector<128x256xf32>, vector<1x256xf32> -> vector<1x256xf32>
    %275 = arith.addf %274, %2 : vector<1x256xf32>
    %276 = vector.extract_strided_slice %275 {offsets = [0, 0], sizes = [1, 128], strides = [1, 1]} : vector<1x256xf32> to vector<1x128xf32>
    %277 = arith.negf %276 : vector<1x128xf32>
    %278 = math.exp %277 : vector<1x128xf32>
    %cst_56 = arith.constant 1.000000e+00 : f32
    %279 = vector.broadcast %cst_56 : f32 to vector<1x128xf32>
    %280 = arith.addf %279, %278 : vector<1x128xf32>
    %281 = arith.divf %279, %280 : vector<1x128xf32>
    %282 = vector.extract_strided_slice %281 {offsets = [0, 0], sizes = [1, 64], strides = [1, 1]} : vector<1x128xf32> to vector<1x64xf32>
    %283 = vector.extract_strided_slice %281 {offsets = [0, 64], sizes = [1, 64], strides = [1, 1]} : vector<1x128xf32> to vector<1x64xf32>
    %284 = vector.extract_strided_slice %275 {offsets = [0, 128], sizes = [1, 64], strides = [1, 1]} : vector<1x256xf32> to vector<1x64xf32>
    %285 = math.tanh %284 : vector<1x64xf32>
    %286 = vector.extract_strided_slice %275 {offsets = [0, 192], sizes = [1, 64], strides = [1, 1]} : vector<1x256xf32> to vector<1x64xf32>
    %287 = arith.negf %286 : vector<1x64xf32>
    %288 = math.exp %287 : vector<1x64xf32>
    %cst_57 = arith.constant 1.000000e+00 : f32
    %289 = vector.broadcast %cst_57 : f32 to vector<1x64xf32>
    %290 = arith.addf %289, %288 : vector<1x64xf32>
    %291 = arith.divf %289, %290 : vector<1x64xf32>
    %292 = arith.mulf %283, %245 : vector<1x64xf32>
    %293 = arith.mulf %282, %285 : vector<1x64xf32>
    %294 = arith.addf %292, %293 : vector<1x64xf32>
    %295 = math.tanh %294 : vector<1x64xf32>
    %296 = arith.mulf %291, %295 : vector<1x64xf32>
    %c5_58 = arith.constant 5 : index
    %c0_59 = arith.constant 0 : index
    %297 = vector.load %arg9[%c5_58, %c0_59] : memref<8x64xf32, #tpu.memory_space<vmem>>, vector<1x64xf32>
    tpu.vector_store %arg9[%c5_58, %c0_59], %296 {strides = array<i32>} : memref<8x64xf32, #tpu.memory_space<vmem>>, vector<1x64xf32>,
    %c6 = arith.constant 6 : index
    %c0_60 = arith.constant 0 : index
    %298 = vector.load %arg0[%c6, %c0_60] : memref<8x256xf32, #tpu.memory_space<vmem>>, vector<1x256xf32>
    %cst_61 = arith.constant dense<0.000000e+00> : vector<1x256xf32>
    %299 = tpu.matmul %272, %0, %cst_61 {dimension_numbers = #tpu.dot_dimension_numbers<[1], [0], [0], [1], [0, 0, 1, 1], [], []>} : vector<1x64xf32>, vector<64x256xf32>, vector<1x256xf32> -> vector<1x256xf32>
    %300 = arith.addf %298, %299 : vector<1x256xf32>
    %301 = vector.extract_strided_slice %300 {offsets = [0, 0], sizes = [1, 128], strides = [1, 1]} : vector<1x256xf32> to vector<1x128xf32>
    %302 = arith.negf %301 : vector<1x128xf32>
    %303 = math.exp %302 : vector<1x128xf32>
    %cst_62 = arith.constant 1.000000e+00 : f32
    %304 = vector.broadcast %cst_62 : f32 to vector<1x128xf32>
    %305 = arith.addf %304, %303 : vector<1x128xf32>
    %306 = arith.divf %304, %305 : vector<1x128xf32>
    %307 = vector.extract_strided_slice %306 {offsets = [0, 0], sizes = [1, 64], strides = [1, 1]} : vector<1x128xf32> to vector<1x64xf32>
    %308 = vector.extract_strided_slice %306 {offsets = [0, 64], sizes = [1, 64], strides = [1, 1]} : vector<1x128xf32> to vector<1x64xf32>
    %309 = vector.extract_strided_slice %300 {offsets = [0, 128], sizes = [1, 64], strides = [1, 1]} : vector<1x256xf32> to vector<1x64xf32>
    %310 = math.tanh %309 : vector<1x64xf32>
    %311 = vector.extract_strided_slice %300 {offsets = [0, 192], sizes = [1, 64], strides = [1, 1]} : vector<1x256xf32> to vector<1x64xf32>
    %312 = arith.negf %311 : vector<1x64xf32>
    %313 = math.exp %312 : vector<1x64xf32>
    %cst_63 = arith.constant 1.000000e+00 : f32
    %314 = vector.broadcast %cst_63 : f32 to vector<1x64xf32>
    %315 = arith.addf %314, %313 : vector<1x64xf32>
    %316 = arith.divf %314, %315 : vector<1x64xf32>
    %317 = arith.mulf %308, %270 : vector<1x64xf32>
    %318 = arith.mulf %307, %310 : vector<1x64xf32>
    %319 = arith.addf %317, %318 : vector<1x64xf32>
    %320 = math.tanh %319 : vector<1x64xf32>
    %321 = arith.mulf %316, %320 : vector<1x64xf32>
    %322 = tpu.concatenate %321, %296 in 1 : vector<1x64xf32>, vector<1x64xf32> -> vector<1x128xf32>
    %cst_64 = arith.constant dense<0.000000e+00> : vector<1x256xf32>
    %323 = tpu.matmul %322, %1, %cst_64 {dimension_numbers = #tpu.dot_dimension_numbers<[1], [0], [0], [1], [0, 0, 1, 1], [], []>} : vector<1x128xf32>, vector<128x256xf32>, vector<1x256xf32> -> vector<1x256xf32>
    %324 = arith.addf %323, %2 : vector<1x256xf32>
    %325 = vector.extract_strided_slice %324 {offsets = [0, 0], sizes = [1, 128], strides = [1, 1]} : vector<1x256xf32> to vector<1x128xf32>
    %326 = arith.negf %325 : vector<1x128xf32>
    %327 = math.exp %326 : vector<1x128xf32>
    %cst_65 = arith.constant 1.000000e+00 : f32
    %328 = vector.broadcast %cst_65 : f32 to vector<1x128xf32>
    %329 = arith.addf %328, %327 : vector<1x128xf32>
    %330 = arith.divf %328, %329 : vector<1x128xf32>
    %331 = vector.extract_strided_slice %330 {offsets = [0, 0], sizes = [1, 64], strides = [1, 1]} : vector<1x128xf32> to vector<1x64xf32>
    %332 = vector.extract_strided_slice %330 {offsets = [0, 64], sizes = [1, 64], strides = [1, 1]} : vector<1x128xf32> to vector<1x64xf32>
    %333 = vector.extract_strided_slice %324 {offsets = [0, 128], sizes = [1, 64], strides = [1, 1]} : vector<1x256xf32> to vector<1x64xf32>
    %334 = math.tanh %333 : vector<1x64xf32>
    %335 = vector.extract_strided_slice %324 {offsets = [0, 192], sizes = [1, 64], strides = [1, 1]} : vector<1x256xf32> to vector<1x64xf32>
    %336 = arith.negf %335 : vector<1x64xf32>
    %337 = math.exp %336 : vector<1x64xf32>
    %cst_66 = arith.constant 1.000000e+00 : f32
    %338 = vector.broadcast %cst_66 : f32 to vector<1x64xf32>
    %339 = arith.addf %338, %337 : vector<1x64xf32>
    %340 = arith.divf %338, %339 : vector<1x64xf32>
    %341 = arith.mulf %332, %294 : vector<1x64xf32>
    %342 = arith.mulf %331, %334 : vector<1x64xf32>
    %343 = arith.addf %341, %342 : vector<1x64xf32>
    %344 = math.tanh %343 : vector<1x64xf32>
    %345 = arith.mulf %340, %344 : vector<1x64xf32>
    %c6_67 = arith.constant 6 : index
    %c0_68 = arith.constant 0 : index
    %346 = vector.load %arg9[%c6_67, %c0_68] : memref<8x64xf32, #tpu.memory_space<vmem>>, vector<1x64xf32>
    tpu.vector_store %arg9[%c6_67, %c0_68], %345 {strides = array<i32>} : memref<8x64xf32, #tpu.memory_space<vmem>>, vector<1x64xf32>,
    %c7 = arith.constant 7 : index
    %c0_69 = arith.constant 0 : index
    %347 = vector.load %arg0[%c7, %c0_69] : memref<8x256xf32, #tpu.memory_space<vmem>>, vector<1x256xf32>
    %cst_70 = arith.constant dense<0.000000e+00> : vector<1x256xf32>
    %348 = tpu.matmul %321, %0, %cst_70 {dimension_numbers = #tpu.dot_dimension_numbers<[1], [0], [0], [1], [0, 0, 1, 1], [], []>} : vector<1x64xf32>, vector<64x256xf32>, vector<1x256xf32> -> vector<1x256xf32>
    %349 = arith.addf %347, %348 : vector<1x256xf32>
    %350 = vector.extract_strided_slice %349 {offsets = [0, 0], sizes = [1, 128], strides = [1, 1]} : vector<1x256xf32> to vector<1x128xf32>
    %351 = arith.negf %350 : vector<1x128xf32>
    %352 = math.exp %351 : vector<1x128xf32>
    %cst_71 = arith.constant 1.000000e+00 : f32
    %353 = vector.broadcast %cst_71 : f32 to vector<1x128xf32>
    %354 = arith.addf %353, %352 : vector<1x128xf32>
    %355 = arith.divf %353, %354 : vector<1x128xf32>
    %356 = vector.extract_strided_slice %355 {offsets = [0, 0], sizes = [1, 64], strides = [1, 1]} : vector<1x128xf32> to vector<1x64xf32>
    %357 = vector.extract_strided_slice %355 {offsets = [0, 64], sizes = [1, 64], strides = [1, 1]} : vector<1x128xf32> to vector<1x64xf32>
    %358 = vector.extract_strided_slice %349 {offsets = [0, 128], sizes = [1, 64], strides = [1, 1]} : vector<1x256xf32> to vector<1x64xf32>
    %359 = math.tanh %358 : vector<1x64xf32>
    %360 = vector.extract_strided_slice %349 {offsets = [0, 192], sizes = [1, 64], strides = [1, 1]} : vector<1x256xf32> to vector<1x64xf32>
    %361 = arith.negf %360 : vector<1x64xf32>
    %362 = math.exp %361 : vector<1x64xf32>
    %cst_72 = arith.constant 1.000000e+00 : f32
    %363 = vector.broadcast %cst_72 : f32 to vector<1x64xf32>
    %364 = arith.addf %363, %362 : vector<1x64xf32>
    %365 = arith.divf %363, %364 : vector<1x64xf32>
    %366 = arith.mulf %357, %319 : vector<1x64xf32>
    %367 = arith.mulf %356, %359 : vector<1x64xf32>
    %368 = arith.addf %366, %367 : vector<1x64xf32>
    %369 = math.tanh %368 : vector<1x64xf32>
    %370 = arith.mulf %365, %369 : vector<1x64xf32>
    %371 = tpu.concatenate %370, %345 in 1 : vector<1x64xf32>, vector<1x64xf32> -> vector<1x128xf32>
    %cst_73 = arith.constant dense<0.000000e+00> : vector<1x256xf32>
    %372 = tpu.matmul %371, %1, %cst_73 {dimension_numbers = #tpu.dot_dimension_numbers<[1], [0], [0], [1], [0, 0, 1, 1], [], []>} : vector<1x128xf32>, vector<128x256xf32>, vector<1x256xf32> -> vector<1x256xf32>
    %373 = arith.addf %372, %2 : vector<1x256xf32>
    %374 = vector.extract_strided_slice %373 {offsets = [0, 0], sizes = [1, 128], strides = [1, 1]} : vector<1x256xf32> to vector<1x128xf32>
    %375 = arith.negf %374 : vector<1x128xf32>
    %376 = math.exp %375 : vector<1x128xf32>
    %cst_74 = arith.constant 1.000000e+00 : f32
    %377 = vector.broadcast %cst_74 : f32 to vector<1x128xf32>
    %378 = arith.addf %377, %376 : vector<1x128xf32>
    %379 = arith.divf %377, %378 : vector<1x128xf32>
    %380 = vector.extract_strided_slice %379 {offsets = [0, 0], sizes = [1, 64], strides = [1, 1]} : vector<1x128xf32> to vector<1x64xf32>
    %381 = vector.extract_strided_slice %379 {offsets = [0, 64], sizes = [1, 64], strides = [1, 1]} : vector<1x128xf32> to vector<1x64xf32>
    %382 = vector.extract_strided_slice %373 {offsets = [0, 128], sizes = [1, 64], strides = [1, 1]} : vector<1x256xf32> to vector<1x64xf32>
    %383 = math.tanh %382 : vector<1x64xf32>
    %384 = vector.extract_strided_slice %373 {offsets = [0, 192], sizes = [1, 64], strides = [1, 1]} : vector<1x256xf32> to vector<1x64xf32>
    %385 = arith.negf %384 : vector<1x64xf32>
    %386 = math.exp %385 : vector<1x64xf32>
    %cst_75 = arith.constant 1.000000e+00 : f32
    %387 = vector.broadcast %cst_75 : f32 to vector<1x64xf32>
    %388 = arith.addf %387, %386 : vector<1x64xf32>
    %389 = arith.divf %387, %388 : vector<1x64xf32>
    %390 = arith.mulf %381, %343 : vector<1x64xf32>
    %391 = arith.mulf %380, %383 : vector<1x64xf32>
    %392 = arith.addf %390, %391 : vector<1x64xf32>
    %393 = math.tanh %392 : vector<1x64xf32>
    %394 = arith.mulf %389, %393 : vector<1x64xf32>
    %c7_76 = arith.constant 7 : index
    %c0_77 = arith.constant 0 : index
    %395 = vector.load %arg9[%c7_76, %c0_77] : memref<8x64xf32, #tpu.memory_space<vmem>>, vector<1x64xf32>
    tpu.vector_store %arg9[%c7_76, %c0_77], %394 {strides = array<i32>} : memref<8x64xf32, #tpu.memory_space<vmem>>, vector<1x64xf32>,
    %c0_78 = arith.constant 0 : index
    %c0_79 = arith.constant 0 : index
    %396 = vector.load %arg9[%c0_78, %c0_79] : memref<8x64xf32, #tpu.memory_space<vmem>>, vector<8x64xf32>
    %cst_80 = arith.constant 0.000000e+00 : f32
    %397 = vector.broadcast %cst_80 : f32 to vector<8x64xf32>
    %398 = arith.maximumf %396, %397 : vector<8x64xf32>
    %c0_81 = arith.constant 0 : index
    %c0_82 = arith.constant 0 : index
    %399 = vector.load %arg4[%c0_81, %c0_82] : memref<64x128xf32, #tpu.memory_space<vmem>>, vector<64x128xf32>
    %cst_83 = arith.constant dense<0.000000e+00> : vector<8x128xf32>
    %400 = tpu.matmul %398, %399, %cst_83 {dimension_numbers = #tpu.dot_dimension_numbers<[1], [0], [0], [1], [0, 0, 1, 1], [], []>} : vector<8x64xf32>, vector<64x128xf32>, vector<8x128xf32> -> vector<8x128xf32>
    %c0_84 = arith.constant 0 : index
    %c0_85 = arith.constant 0 : index
    %401 = vector.load %arg5[%c0_84, %c0_85] : memref<1x128xf32, #tpu.memory_space<vmem>>, vector<1x128xf32>
    %402 = vector.broadcast %401 : vector<1x128xf32> to vector<8x128xf32>
    %403 = arith.addf %400, %402 : vector<8x128xf32>
    %cst_86 = arith.constant 0.000000e+00 : f32
    %404 = vector.broadcast %cst_86 : f32 to vector<8x128xf32>
    %405 = arith.maximumf %403, %404 : vector<8x128xf32>
    %c0_87 = arith.constant 0 : index
    %c0_88 = arith.constant 0 : index
    %406 = vector.load %arg6[%c0_87, %c0_88] : memref<1x128xf32, #tpu.memory_space<vmem>>, vector<1x128xf32>
    %407 = vector.broadcast %406 : vector<1x128xf32> to vector<8x128xf32>
    %408 = arith.mulf %405, %407 : vector<8x128xf32>
    %cst_89 = arith.constant dense<0.000000e+00> : vector<8xf32>
    %409 = vector.multi_reduction <add>, %408, %cst_89 [1] : vector<8x128xf32> to vector<8xf32>
    %410 = vector.shape_cast %409 : vector<8xf32> to vector<8x1xf32>
    %c0_90 = arith.constant 0 : index
    %c0_91 = arith.constant 0 : index
    %411 = vector.load %arg7[%c0_90, %c0_91] : memref<1x1xf32, #tpu.memory_space<vmem>>, vector<1x1xf32>
    %412 = vector.broadcast %411 : vector<1x1xf32> to vector<8x1xf32>
    %413 = arith.addf %410, %412 : vector<8x1xf32>
    %c0_92 = arith.constant 0 : index
    %c0_93 = arith.constant 0 : index
    %414 = vector.load %arg8[%c0_92, %c0_93] : memref<8x1xf32, #tpu.memory_space<vmem>>, vector<8x1xf32>
    tpu.vector_store %arg8[%c0_92, %c0_93], %413 {strides = array<i32>} : memref<8x1xf32, #tpu.memory_space<vmem>>, vector<8x1xf32>,
    return
  }
}

</mosaic_0001>

<llo_original>
// kernel: tpu_custom_call.1
$region0: #{tpu_custom_call.1}
  #allocation0 [shape = 'u32[]', space=smem, size = 0x4, offset = 0x4, fixed_abs, tag = 'smem constant byte address 0x4 - core index']
  #allocation1 [shape = 'u32[144,128]{1,0:T(1,128)}', space=vmem, size = 0x12000, scoped, tag = 'internal scratch']
  #allocation2 [shape = 'f32[8,64]{1,0:T(8,128)}', space=vmem, size = 0x1000, scoped, tag = 'scratch operand']
  #allocation3 [shape = 'f32[1,1]{1,0:T(1,128)S(1)}', space=vmem, size = 0x200, scoped, tag = 'scoped memory for tpu_custom_call.1']
  %s0 = inlined_call_operand.hbm [shape: f32[8,256], index: 0, kind: input, shape index: {}]
  %s1 = inlined_call_operand.hbm [shape: f32[64,256], index: 1, kind: input, shape index: {}]
  %s2 = inlined_call_operand.hbm [shape: f32[128,256], index: 2, kind: input, shape index: {}]
  %s3 = inlined_call_operand.vmem [shape: f32[1,256], index: 3, kind: input, shape index: {}]
  %s4 = inlined_call_operand.hbm [shape: f32[64,128], index: 4, kind: input, shape index: {}]
  %s5 = inlined_call_operand.vmem [shape: f32[1,128], index: 5, kind: input, shape index: {}]
  %s6 = inlined_call_operand.vmem [shape: f32[1,128], index: 6, kind: input, shape index: {}]
  %s7 = inlined_call_operand.<no memory space> [shape: f32[1,1], index: 7, kind: input, shape index: {}]
  %s8 = inlined_call_operand.vmem [shape: f32[8,1], index: 8, kind: output, shape index: {}]
  %s9 = sld [smem:[#allocation0]]
  $region58: #{tpu_custom_call.1} parent=0
    _
  %s11 = ssub.s32 1, %s9
  %s12 = scalar_select 0, %s11, %s9
  %v13 = vstv %s7
  %14 = vst [vmem:[#allocation3] sm:$0x1] %v13
  $region1: #{tpu_custom_call.1} parent=0
    #allocation4 [shape = 'u8[8192]{0}', space=vmem, size = 0x2000, scoped, tag = 'input window, operand 0, single buffered']
    #allocation5 [shape = 's32[1]{0}', space=sflag, size = 0x4, scoped, tag = 'scoped memory for tpu_custom_call.1']
    #allocation6 [shape = 'u8[65536]{0}', space=vmem, size = 0x10000, scoped, tag = 'input window, operand 1, single buffered']
    #allocation7 [shape = 's32[1]{0}', space=sflag, size = 0x4, scoped, tag = 'scoped memory for tpu_custom_call.1']
    #allocation8 [shape = 'u8[131072]{0}', space=vmem, size = 0x20000, scoped, tag = 'input window, operand 2, single buffered']
    #allocation9 [shape = 'u8[32768]{0}', space=vmem, size = 0x8000, scoped, tag = 'input window, operand 4, single buffered']
    #allocation10 [shape = 's32[1]{0}', space=sflag, size = 0x4, scoped, tag = 'scoped memory for tpu_custom_call.1']
    %15 = vsyncpa [#allocation5], 0
    %16 = vsyncpa [#allocation7], 0
    %17 = vsyncpa [#allocation10], 0
    // Predicated region
    $region2: #{tpu_custom_call.1} parent=1 // pred_check
      _
    $region3: #{tpu_custom_call.1} parent=1 // pred_check_branch
      %19 = sbr.rel (0) target = $region5
    $region4: #{tpu_custom_call.1} parent=1 // pred_region
      %s21 = ssub.s32 256, 256
      %22 = vsyncadd [#allocation5], %s21
      %s24 = sshll.u32 [#allocation4], 4
      %s25 = int_to_ptr.vmem [resolvable:$true] %s24
      %27 = dma.hbm_to_vmem [thread:$0]  %s0, 256, %s25, [#allocation5]
    $region5: #{tpu_custom_call.1} parent=1 // pred_fallthru
      _
    // Predicated region
    $region6: #{tpu_custom_call.1} parent=1 // pred_check
      _
    $region7: #{tpu_custom_call.1} parent=1 // pred_check_branch
      %29 = sbr.rel (0) target = $region9
    $region8: #{tpu_custom_call.1} parent=1 // pred_region
      %s31 = ssub.s32 2048, 2048
      %32 = vsyncadd [#allocation7], %s31
      %s33 = sshll.u32 [#allocation6], 4
      %s34 = int_to_ptr.vmem [resolvable:$true] %s33
      %39 = dma.hbm_to_vmem [thread:$0]  %s1, 2048, %s34, [#allocation7], 256, 256, 16
    $region9: #{tpu_custom_call.1} parent=1 // pred_fallthru
      _
    // Predicated region
    $region10: #{tpu_custom_call.1} parent=1 // pred_check
      _
    $region11: #{tpu_custom_call.1} parent=1 // pred_check_branch
      %41 = sbr.rel (0) target = $region13
    $region12: #{tpu_custom_call.1} parent=1 // pred_region
      %s43 = ssub.s32 4096, 4096
      %44 = vsyncadd [#allocation7], %s43
      %s45 = sshll.u32 [#allocation8], 4
      %s46 = int_to_ptr.vmem [resolvable:$true] %s45
      %51 = dma.hbm_to_vmem [thread:$0]  %s2, 4096, %s46, [#allocation7], 256, 256, 16
    $region13: #{tpu_custom_call.1} parent=1 // pred_fallthru
      _
    // Predicated region
    $region14: #{tpu_custom_call.1} parent=1 // pred_check
      _
    $region15: #{tpu_custom_call.1} parent=1 // pred_check_branch
      %53 = sbr.rel (0) target = $region17
    $region16: #{tpu_custom_call.1} parent=1 // pred_region
      _
    $region17: #{tpu_custom_call.1} parent=1 // pred_fallthru
      _
    // Predicated region
    $region18: #{tpu_custom_call.1} parent=1 // pred_check
      _
    $region19: #{tpu_custom_call.1} parent=1 // pred_check_branch
      %55 = sbr.rel (0) target = $region21
    $region20: #{tpu_custom_call.1} parent=1 // pred_region
      %s57 = ssub.s32 1024, 1024
      %58 = vsyncadd [#allocation10], %s57
      %s59 = sshll.u32 [#allocation9], 4
      %s60 = int_to_ptr.vmem [resolvable:$true] %s59
      %65 = dma.hbm_to_vmem [thread:$0]  %s4, 1024, %s60, [#allocation10], 128, 128, 8
    $region21: #{tpu_custom_call.1} parent=1 // pred_fallthru
      _
    // Predicated region
    $region22: #{tpu_custom_call.1} parent=1 // pred_check
      _
    $region23: #{tpu_custom_call.1} parent=1 // pred_check_branch
      %67 = sbr.rel (0) target = $region25
    $region24: #{tpu_custom_call.1} parent=1 // pred_region
      _
    $region25: #{tpu_custom_call.1} parent=1 // pred_fallthru
      _
    // Predicated region
    $region26: #{tpu_custom_call.1} parent=1 // pred_check
      _
    $region27: #{tpu_custom_call.1} parent=1 // pred_check_branch
      %69 = sbr.rel (0) target = $region29
    $region28: #{tpu_custom_call.1} parent=1 // pred_region
      _
    $region29: #{tpu_custom_call.1} parent=1 // pred_fallthru
      _
    // Predicated region
    $region30: #{tpu_custom_call.1} parent=1 // pred_check
      _
    $region31: #{tpu_custom_call.1} parent=1 // pred_check_branch
      %71 = sbr.rel (0) target = $region33
    $region32: #{tpu_custom_call.1} parent=1 // pred_region
      _
    $region33: #{tpu_custom_call.1} parent=1 // pred_fallthru
      _
    // Predicated region
    $region34: #{tpu_custom_call.1} parent=1 // pred_check
      _
    $region35: #{tpu_custom_call.1} parent=1 // pred_check_branch
      %73 = sbr.rel (0) target = $region37
    $region36: #{tpu_custom_call.1} parent=1 // pred_region
      %74 = dma.done [#allocation5], 256
    $region37: #{tpu_custom_call.1} parent=1 // pred_fallthru
      _
    // Predicated region
    $region38: #{tpu_custom_call.1} parent=1 // pred_check
      _
    $region39: #{tpu_custom_call.1} parent=1 // pred_check_branch
      %76 = sbr.rel (0) target = $region41
    $region40: #{tpu_custom_call.1} parent=1 // pred_region
      %77 = dma.done [#allocation7], 2048
    $region41: #{tpu_custom_call.1} parent=1 // pred_fallthru
      _
    // Predicated region
    $region42: #{tpu_custom_call.1} parent=1 // pred_check
      _
    $region43: #{tpu_custom_call.1} parent=1 // pred_check_branch
      %79 = sbr.rel (0) target = $region45
    $region44: #{tpu_custom_call.1} parent=1 // pred_region
      %80 = dma.done [#allocation7], 4096
    $region45: #{tpu_custom_call.1} parent=1 // pred_fallthru
      _
    // Predicated region
    $region46: #{tpu_custom_call.1} parent=1 // pred_check
      _
    $region47: #{tpu_custom_call.1} parent=1 // pred_check_branch
      %82 = sbr.rel (0) target = $region49
    $region48: #{tpu_custom_call.1} parent=1 // pred_region
      %83 = dma.done [#allocation10], 1024
    $region49: #{tpu_custom_call.1} parent=1 // pred_fallthru
      _
    %v84 = vld [vmem:[#allocation6] sm:$0xff]
    %v85 = vld [vmem:[#allocation6 + $0x8] sm:$0xff]
    %v86 = vld [vmem:[#allocation6 + $0x10] sm:$0xff]
    %v87 = vld [vmem:[#allocation6 + $0x18] sm:$0xff]
    %v88 = vld [vmem:[#allocation6 + $0x20] sm:$0xff]
    %v89 = vld [vmem:[#allocation6 + $0x28] sm:$0xff]
    %v90 = vld [vmem:[#allocation6 + $0x30] sm:$0xff]
    %v91 = vld [vmem:[#allocation6 + $0x38] sm:$0xff]
    %v92 = vld [vmem:[#allocation6 + $0x40] sm:$0xff]
    %v93 = vld [vmem:[#allocation6 + $0x48] sm:$0xff]
    %v94 = vld [vmem:[#allocation6 + $0x50] sm:$0xff]
    %v95 = vld [vmem:[#allocation6 + $0x58] sm:$0xff]
    %v96 = vld [vmem:[#allocation6 + $0x60] sm:$0xff]
    %v97 = vld [vmem:[#allocation6 + $0x68] sm:$0xff]
    %v98 = vld [vmem:[#allocation6 + $0x70] sm:$0xff]
    %v99 = vld [vmem:[#allocation6 + $0x78] sm:$0xff]
    %v100 = vld [vmem:[#allocation8] sm:$0xff]
    %v101 = vld [vmem:[#allocation8 + $0x8] sm:$0xff]
    %v102 = vld [vmem:[#allocation8 + $0x10] sm:$0xff]
    %v103 = vld [vmem:[#allocation8 + $0x18] sm:$0xff]
    %v104 = vld [vmem:[#allocation8 + $0x20] sm:$0xff]
    %v105 = vld [vmem:[#allocation8 + $0x28] sm:$0xff]
    %v106 = vld [vmem:[#allocation8 + $0x30] sm:$0xff]
    %v107 = vld [vmem:[#allocation8 + $0x38] sm:$0xff]
    %v108 = vld [vmem:[#allocation8 + $0x40] sm:$0xff]
    %v109 = vld [vmem:[#allocation8 + $0x48] sm:$0xff]
    %v110 = vld [vmem:[#allocation8 + $0x50] sm:$0xff]
    %v111 = vld [vmem:[#allocation8 + $0x58] sm:$0xff]
    %v112 = vld [vmem:[#allocation8 + $0x60] sm:$0xff]
    %v113 = vld [vmem:[#allocation8 + $0x68] sm:$0xff]
    %v114 = vld [vmem:[#allocation8 + $0x70] sm:$0xff]
    %v115 = vld [vmem:[#allocation8 + $0x78] sm:$0xff]
    %v116 = vld [vmem:[#allocation8 + $0x80] sm:$0xff]
    %v117 = vld [vmem:[#allocation8 + $0x88] sm:$0xff]
    %v118 = vld [vmem:[#allocation8 + $0x90] sm:$0xff]
    %v119 = vld [vmem:[#allocation8 + $0x98] sm:$0xff]
    %v120 = vld [vmem:[#allocation8 + $0xa0] sm:$0xff]
    %v121 = vld [vmem:[#allocation8 + $0xa8] sm:$0xff]
    %v122 = vld [vmem:[#allocation8 + $0xb0] sm:$0xff]
    %v123 = vld [vmem:[#allocation8 + $0xb8] sm:$0xff]
    %v124 = vld [vmem:[#allocation8 + $0xc0] sm:$0xff]
    %v125 = vld [vmem:[#allocation8 + $0xc8] sm:$0xff]
    %v126 = vld [vmem:[#allocation8 + $0xd0] sm:$0xff]
    %v127 = vld [vmem:[#allocation8 + $0xd8] sm:$0xff]
    %v128 = vld [vmem:[#allocation8 + $0xe0] sm:$0xff]
    %v129 = vld [vmem:[#allocation8 + $0xe8] sm:$0xff]
    %v130 = vld [vmem:[#allocation8 + $0xf0] sm:$0xff]
    %v131 = vld [vmem:[#allocation8 + $0xf8] sm:$0xff]
    %v132 = vld [vmem:[%s3] sm:$0x3]
    %v133 = vld [vmem:[#allocation4] ss:$8 sm:$0x3]
    %vm134 = vcmask 523264
    %v136 = vsel %vm134, 0.0, 0
    %138 = vmatprep.subr.mxu0 %v85
    %139 = vmatpush1.msra.mxu0 %v84
    %140 = vmatprep.subr.mxu0 %v87
    %141 = vmatpush1.msra.mxu0 %v86
    %142 = vmatprep.subr.mxu0 %v89
    %143 = vmatpush1.msra.mxu0 %v88
    %144 = vmatprep.subr.mxu0 %v91
    %145 = vmatpush1.msra.mxu0 %v90
    %146 = vmatprep.subr.mxu0 %v93
    %147 = vmatpush1.msra.mxu0 %v92
    %148 = vmatprep.subr.mxu0 %v95
    %149 = vmatpush1.msra.mxu0 %v94
    %150 = vmatprep.subr.mxu0 %v97
    %151 = vmatpush1.msra.mxu0 %v96
    %152 = vmatprep.subr.mxu0 %v99
    %153 = vmatpush1.msra.mxu0 %v98
    %154 = vmatprep.subr.mxu0 0.0
    %155 = vmatpush1.msra.mxu0 0.0
    %156 = vmatprep.subr.mxu0 0.0
    %157 = vmatpush1.msra.mxu0 0.0
    %158 = vmatprep.subr.mxu0 0.0
    %159 = vmatpush1.msra.mxu0 0.0
    %160 = vmatprep.subr.mxu0 0.0
    %161 = vmatpush1.msra.mxu0 0.0
    %162 = vmatprep.subr.mxu0 0.0
    %163 = vmatpush1.msra.mxu0 0.0
    %164 = vmatprep.subr.mxu0 0.0
    %165 = vmatpush1.msra.mxu0 0.0
    %166 = vmatprep.subr.mxu0 0.0
    %167 = vmatpush1.msra.mxu0 0.0
    %168 = vmatprep.subr.mxu0 0.0
    %169 = vmatpush1.msra.mxu0 0.0
    %170 = vmatprep.subr.mxu0 0.0
    %171 = vmatpush1.msra.mxu0 0.0
    %172 = vmatprep.subr.mxu0 0.0
    %173 = vmatpush1.msra.mxu0 0.0
    %174 = vmatprep.subr.mxu0 0.0
    %175 = vmatpush1.msra.mxu0 0.0
    %176 = vmatprep.subr.mxu0 0.0
    %177 = vmatpush1.msra.mxu0 0.0
    %178 = vmatprep.subr.mxu0 0.0
    %179 = vmatpush1.msra.mxu0 0.0
    %180 = vmatprep.subr.mxu0 0.0
    %181 = vmatpush1.msra.mxu0 0.0
    %182 = vmatprep.subr.mxu0 0.0
    %183 = vmatpush1.msra.mxu0 0.0
    %184 = vmatprep.subr.mxu0 0.0
    %185 = vmatpush1.msra.mxu0 0.0
    %186 = vmatprep.subr.mxu0 0.0
    %187 = vmatpush1.msra.mxu0 0.0
    %188 = vmatprep.subr.mxu0 0.0
    %189 = vmatpush1.msra.mxu0 0.0
    %190 = vmatprep.subr.mxu0 0.0
    %191 = vmatpush1.msra.mxu0 0.0
    %192 = vmatprep.subr.mxu0 0.0
    %193 = vmatpush1.msra.mxu0 0.0
    %194 = vmatprep.subr.mxu0 0.0
    %195 = vmatpush1.msra.mxu0 0.0
    %196 = vmatprep.subr.mxu0 0.0
    %197 = vmatpush1.msra.mxu0 0.0
    %198 = vmatprep.subr.mxu0 0.0
    %199 = vmatpush1.msra.mxu0 0.0
    %200 = vmatprep.subr.mxu0 0.0
    %201 = vmatpush1.msra.mxu0 0.0
    %202 = vmatprep.mubr.f32.mxu0 0.0
    %203 = vmatmul.mubr.f32.gmra.mrb[0].mxu0 %v136
    %v204 = vpop.f32.mrb[0].mxu0
    %v205 = vadd.f32 0.0, %v204
    %v206 = vpop.f32.mrb[0].mxu0
    %v207 = vadd.f32 0.0, %v206
    %208 = vdwg.mxu0
    %v211 = vcombine.low %v205, %v207
    %v213 = vunpack.c.l.s4 1966171168
    %v214 = vunpack.c.0.s8 %v213
    %v215 = vlaneseq
    %v216 = vshrl.u32 %v215, 7
    %v217 = vsub.s32 %v214, %v216
    %v218 = vrot.slane %v211, %v217
    %v220 = vunpack.c.l.s4 1966171168
    %v221 = vunpack.c.0.s8 %v220
    %v222 = vlaneseq
    %v223 = vshrl.u32 %v222, 7
    %v224 = vsub.s32 %v221, %v223
    %v225 = vrot.slane %v218, %v224
    %v227 = vadd.f32 %v133, %v225
    %v228 = vxor.u32 %v227, 2147483648
    %v229 = vmul.f32 %v228, 1.442695
    %v230 = vpow.pop %v229
    %v231 = vadd.f32 %v230, 1.0
    %v232 = vrcp.pop %v231
    %v233 = vmul.f32 1.0, %v232
    %v235 = vrot.slane %v227, 1
    %v237 = vtanh.pop %v235
    %238 = vrot.lane.b32.xlu0 %v227, 64
    %v239 = vpop.permute.xlu0 %238
    %v240 = vrot.slane %v239, 1
    %v242 = vxor.u32 %v240, 2147483648
    %v243 = vmul.f32 %v242, 1.442695
    %v244 = vpow.pop %v243
    %v245 = vadd.f32 %v244, 1.0
    %v246 = vrcp.pop %v245
    %v247 = vmul.f32 1.0, %v246
    %v248 = vmul.f32 %v233, 0.0
    %v249 = vmul.f32 %v233, %v237
    %251 = vrot.lane.b32.xlu0 %v249, 64
    %v252 = vpop.permute.xlu0 %251
    %v254 = vadd.f32 %v248, %v252
    %v255 = vtanh.pop %v254
    %257 = vrot.lane.b32.xlu0 %v255, 64
    %v258 = vpop.permute.xlu0 %257
    %v260 = vmul.f32 %v247, %v258
    %v261 = vsel %vm134, %v260, 0.0
    %v263 = vlaneseq
    %v264 = vshrl.u32 %v263, 7
    %v265 = vsub.s32 0, %v264
    %v266 = vrot.slane %v132, %v265
    %v267 = vlaneseq
    %v268 = vshrl.u32 %v267, 7
    %v269 = vsub.s32 1, %v268
    %v270 = vrot.slane %v132, %v269
    %273 = vmatprep.subr.mxu0 %v101
    %274 = vmatpush1.msra.mxu0 %v100
    %275 = vmatprep.subr.mxu0 %v103
    %276 = vmatpush1.msra.mxu0 %v102
    %277 = vmatprep.subr.mxu0 %v105
    %278 = vmatpush1.msra.mxu0 %v104
    %279 = vmatprep.subr.mxu0 %v107
    %280 = vmatpush1.msra.mxu0 %v106
    %281 = vmatprep.subr.mxu0 %v109
    %282 = vmatpush1.msra.mxu0 %v108
    %283 = vmatprep.subr.mxu0 %v111
    %284 = vmatpush1.msra.mxu0 %v110
    %285 = vmatprep.subr.mxu0 %v113
    %286 = vmatpush1.msra.mxu0 %v112
    %287 = vmatprep.subr.mxu0 %v115
    %288 = vmatpush1.msra.mxu0 %v114
    %289 = vmatprep.subr.mxu0 %v117
    %290 = vmatpush1.msra.mxu0 %v116
    %291 = vmatprep.subr.mxu0 %v119
    %292 = vmatpush1.msra.mxu0 %v118
    %293 = vmatprep.subr.mxu0 %v121
    %294 = vmatpush1.msra.mxu0 %v120
    %295 = vmatprep.subr.mxu0 %v123
    %296 = vmatpush1.msra.mxu0 %v122
    %297 = vmatprep.subr.mxu0 %v125
    %298 = vmatpush1.msra.mxu0 %v124
    %299 = vmatprep.subr.mxu0 %v127
    %300 = vmatpush1.msra.mxu0 %v126
    %301 = vmatprep.subr.mxu0 %v129
    %302 = vmatpush1.msra.mxu0 %v128
    %303 = vmatprep.subr.mxu0 %v131
    %304 = vmatpush1.msra.mxu0 %v130
    %305 = vmatprep.subr.mxu0 0.0
    %306 = vmatpush1.msra.mxu0 0.0
    %307 = vmatprep.subr.mxu0 0.0
    %308 = vmatpush1.msra.mxu0 0.0
    %309 = vmatprep.subr.mxu0 0.0
    %310 = vmatpush1.msra.mxu0 0.0
    %311 = vmatprep.subr.mxu0 0.0
    %312 = vmatpush1.msra.mxu0 0.0
    %313 = vmatprep.subr.mxu0 0.0
    %314 = vmatpush1.msra.mxu0 0.0
    %315 = vmatprep.subr.mxu0 0.0
    %316 = vmatpush1.msra.mxu0 0.0
    %317 = vmatprep.subr.mxu0 0.0
    %318 = vmatpush1.msra.mxu0 0.0
    %319 = vmatprep.subr.mxu0 0.0
    %320 = vmatpush1.msra.mxu0 0.0
    %321 = vmatprep.subr.mxu0 0.0
    %322 = vmatpush1.msra.mxu0 0.0
    %323 = vmatprep.subr.mxu0 0.0
    %324 = vmatpush1.msra.mxu0 0.0
    %325 = vmatprep.subr.mxu0 0.0
    %326 = vmatpush1.msra.mxu0 0.0
    %327 = vmatprep.subr.mxu0 0.0
    %328 = vmatpush1.msra.mxu0 0.0
    %329 = vmatprep.subr.mxu0 0.0
    %330 = vmatpush1.msra.mxu0 0.0
    %331 = vmatprep.subr.mxu0 0.0
    %332 = vmatpush1.msra.mxu0 0.0
    %333 = vmatprep.subr.mxu0 0.0
    %334 = vmatpush1.msra.mxu0 0.0
    %335 = vmatprep.subr.mxu0 0.0
    %336 = vmatpush1.msra.mxu0 0.0
    %337 = vmatprep.mubr.f32.mxu0 0.0
    %338 = vmatmul.mubr.f32.gmra.mrb[0].mxu0 %v261
    %v339 = vpop.f32.mrb[0].mxu0
    %v340 = vadd.f32 %v266, %v339
    %v341 = vpop.f32.mrb[0].mxu0
    %v342 = vadd.f32 %v270, %v341
    %343 = vdwg.mxu0
    %v344 = vxor.u32 %v340, 2147483648
    %v345 = vmul.f32 %v344, 1.442695
    %v346 = vpow.pop %v345
    %v347 = vadd.f32 %v346, 1.0
    %v348 = vrcp.pop %v347
    %v349 = vmul.f32 1.0, %v348
    %v350 = vtanh.pop %v342
    %v351 = vxor.u32 %v342, 2147483648
    %v352 = vmul.f32 %v351, 1.442695
    %v353 = vpow.pop %v352
    %v354 = vadd.f32 %v353, 1.0
    %v355 = vrcp.pop %v354
    %v356 = vmul.f32 1.0, %v355
    %v357 = vmul.f32 %v349, 0.0
    %v358 = vmul.f32 %v349, %v350
    %360 = vrot.lane.b32.xlu0 %v358, 64
    %v361 = vpop.permute.xlu0 %360
    %v363 = vadd.f32 %v357, %v361
    %v364 = vtanh.pop %v363
    %v365 = vmul.f32 %v356, %v364
    %367 = vrot.lane.b32.xlu0 %v365, 64
    %v368 = vpop.permute.xlu0 %367
    %vm370 = vcmask 516096
    %371 = vst.msk [vmem:[#allocation2] sm:$0x1] %vm370, %v368
    %s372 = scalar_lea.vmem [#allocation4], 1
    %v373 = vld [vmem:[%s372] ss:$8 sm:$0x3]
    %v375 = vsel %vm134, %v260, 0
    %377 = vmatprep.subr.mxu0 %v85
    %378 = vmatpush1.msra.mxu0 %v84
    %379 = vmatprep.subr.mxu0 %v87
    %380 = vmatpush1.msra.mxu0 %v86
    %381 = vmatprep.subr.mxu0 %v89
    %382 = vmatpush1.msra.mxu0 %v88
    %383 = vmatprep.subr.mxu0 %v91
    %384 = vmatpush1.msra.mxu0 %v90
    %385 = vmatprep.subr.mxu0 %v93
    %386 = vmatpush1.msra.mxu0 %v92
    %387 = vmatprep.subr.mxu0 %v95
    %388 = vmatpush1.msra.mxu0 %v94
    %389 = vmatprep.subr.mxu0 %v97
    %390 = vmatpush1.msra.mxu0 %v96
    %391 = vmatprep.subr.mxu0 %v99
    %392 = vmatpush1.msra.mxu0 %v98
    %393 = vmatprep.subr.mxu0 0.0
    %394 = vmatpush1.msra.mxu0 0.0
    %395 = vmatprep.subr.mxu0 0.0
    %396 = vmatpush1.msra.mxu0 0.0
    %397 = vmatprep.subr.mxu0 0.0
    %398 = vmatpush1.msra.mxu0 0.0
    %399 = vmatprep.subr.mxu0 0.0
    %400 = vmatpush1.msra.mxu0 0.0
    %401 = vmatprep.subr.mxu0 0.0
    %402 = vmatpush1.msra.mxu0 0.0
    %403 = vmatprep.subr.mxu0 0.0
    %404 = vmatpush1.msra.mxu0 0.0
    %405 = vmatprep.subr.mxu0 0.0
    %406 = vmatpush1.msra.mxu0 0.0
    %407 = vmatprep.subr.mxu0 0.0
    %408 = vmatpush1.msra.mxu0 0.0
    %409 = vmatprep.subr.mxu0 0.0
    %410 = vmatpush1.msra.mxu0 0.0
    %411 = vmatprep.subr.mxu0 0.0
    %412 = vmatpush1.msra.mxu0 0.0
    %413 = vmatprep.subr.mxu0 0.0
    %414 = vmatpush1.msra.mxu0 0.0
    %415 = vmatprep.subr.mxu0 0.0
    %416 = vmatpush1.msra.mxu0 0.0
    %417 = vmatprep.subr.mxu0 0.0
    %418 = vmatpush1.msra.mxu0 0.0
    %419 = vmatprep.subr.mxu0 0.0
    %420 = vmatpush1.msra.mxu0 0.0
    %421 = vmatprep.subr.mxu0 0.0
    %422 = vmatpush1.msra.mxu0 0.0
    %423 = vmatprep.subr.mxu0 0.0
    %424 = vmatpush1.msra.mxu0 0.0
    %425 = vmatprep.subr.mxu0 0.0
    %426 = vmatpush1.msra.mxu0 0.0
    %427 = vmatprep.subr.mxu0 0.0
    %428 = vmatpush1.msra.mxu0 0.0
    %429 = vmatprep.subr.mxu0 0.0
    %430 = vmatpush1.msra.mxu0 0.0
    %431 = vmatprep.subr.mxu0 0.0
    %432 = vmatpush1.msra.mxu0 0.0
    %433 = vmatprep.subr.mxu0 0.0
    %434 = vmatpush1.msra.mxu0 0.0
    %435 = vmatprep.subr.mxu0 0.0
    %436 = vmatpush1.msra.mxu0 0.0
    %437 = vmatprep.subr.mxu0 0.0
    %438 = vmatpush1.msra.mxu0 0.0
    %439 = vmatprep.subr.mxu0 0.0
    %440 = vmatpush1.msra.mxu0 0.0
    %441 = vmatprep.mubr.f32.mxu0 0.0
    %442 = vmatmul.mubr.f32.gmra.mrb[0].mxu0 %v375
    %v443 = vpop.f32.mrb[0].mxu0
    %v444 = vadd.f32 0.0, %v443
    %v445 = vpop.f32.mrb[0].mxu0
    %v446 = vadd.f32 0.0, %v445
    %447 = vdwg.mxu0
    %v450 = vcombine.low %v444, %v446
    %v452 = vunpack.c.l.s4 1966171168
    %v453 = vunpack.c.0.s8 %v452
    %v454 = vlaneseq
    %v455 = vshrl.u32 %v454, 7
    %v456 = vsub.s32 %v453, %v455
    %v457 = vrot.slane %v450, %v456
    %v459 = vunpack.c.l.s4 1966171168
    %v460 = vunpack.c.0.s8 %v459
    %v461 = vlaneseq
    %v462 = vshrl.u32 %v461, 7
    %v463 = vsub.s32 %v460, %v462
    %v464 = vrot.slane %v457, %v463
    %v466 = vadd.f32 %v373, %v464
    %v467 = vxor.u32 %v466, 2147483648
    %v468 = vmul.f32 %v467, 1.442695
    %v469 = vpow.pop %v468
    %v470 = vadd.f32 %v469, 1.0
    %v471 = vrcp.pop %v470
    %v472 = vmul.f32 1.0, %v471
    %v474 = vrot.slane %v466, 1
    %v476 = vtanh.pop %v474
    %477 = vrot.lane.b32.xlu0 %v466, 64
    %v478 = vpop.permute.xlu0 %477
    %v479 = vrot.slane %v478, 1
    %v481 = vxor.u32 %v479, 2147483648
    %v482 = vmul.f32 %v481, 1.442695
    %v483 = vpow.pop %v482
    %v484 = vadd.f32 %v483, 1.0
    %v485 = vrcp.pop %v484
    %v486 = vmul.f32 1.0, %v485
    %v487 = vmul.f32 %v472, %v254
    %v488 = vmul.f32 %v472, %v476
    %490 = vrot.lane.b32.xlu0 %v488, 64
    %v491 = vpop.permute.xlu0 %490
    %v493 = vadd.f32 %v487, %v491
    %v494 = vtanh.pop %v493
    %496 = vrot.lane.b32.xlu0 %v494, 64
    %v497 = vpop.permute.xlu0 %496
    %v499 = vmul.f32 %v486, %v497
    %v500 = vsel %vm134, %v499, %v365
    %501 = vmatprep.subr.mxu0 %v101
    %502 = vmatpush1.msra.mxu0 %v100
    %503 = vmatprep.subr.mxu0 %v103
    %504 = vmatpush1.msra.mxu0 %v102
    %505 = vmatprep.subr.mxu0 %v105
    %506 = vmatpush1.msra.mxu0 %v104
    %507 = vmatprep.subr.mxu0 %v107
    %508 = vmatpush1.msra.mxu0 %v106
    %509 = vmatprep.subr.mxu0 %v109
    %510 = vmatpush1.msra.mxu0 %v108
    %511 = vmatprep.subr.mxu0 %v111
    %512 = vmatpush1.msra.mxu0 %v110
    %513 = vmatprep.subr.mxu0 %v113
    %514 = vmatpush1.msra.mxu0 %v112
    %515 = vmatprep.subr.mxu0 %v115
    %516 = vmatpush1.msra.mxu0 %v114
    %517 = vmatprep.subr.mxu0 %v117
    %518 = vmatpush1.msra.mxu0 %v116
    %519 = vmatprep.subr.mxu0 %v119
    %520 = vmatpush1.msra.mxu0 %v118
    %521 = vmatprep.subr.mxu0 %v121
    %522 = vmatpush1.msra.mxu0 %v120
    %523 = vmatprep.subr.mxu0 %v123
    %524 = vmatpush1.msra.mxu0 %v122
    %525 = vmatprep.subr.mxu0 %v125
    %526 = vmatpush1.msra.mxu0 %v124
    %527 = vmatprep.subr.mxu0 %v127
    %528 = vmatpush1.msra.mxu0 %v126
    %529 = vmatprep.subr.mxu0 %v129
    %530 = vmatpush1.msra.mxu0 %v128
    %531 = vmatprep.subr.mxu0 %v131
    %532 = vmatpush1.msra.mxu0 %v130
    %533 = vmatprep.subr.mxu0 0.0
    %534 = vmatpush1.msra.mxu0 0.0
    %535 = vmatprep.subr.mxu0 0.0
    %536 = vmatpush1.msra.mxu0 0.0
    %537 = vmatprep.subr.mxu0 0.0
    %538 = vmatpush1.msra.mxu0 0.0
    %539 = vmatprep.subr.mxu0 0.0
    %540 = vmatpush1.msra.mxu0 0.0
    %541 = vmatprep.subr.mxu0 0.0
    %542 = vmatpush1.msra.mxu0 0.0
    %543 = vmatprep.subr.mxu0 0.0
    %544 = vmatpush1.msra.mxu0 0.0
    %545 = vmatprep.subr.mxu0 0.0
    %546 = vmatpush1.msra.mxu0 0.0
    %547 = vmatprep.subr.mxu0 0.0
    %548 = vmatpush1.msra.mxu0 0.0
    %549 = vmatprep.subr.mxu0 0.0
    %550 = vmatpush1.msra.mxu0 0.0
    %551 = vmatprep.subr.mxu0 0.0
    %552 = vmatpush1.msra.mxu0 0.0
    %553 = vmatprep.subr.mxu0 0.0
    %554 = vmatpush1.msra.mxu0 0.0
    %555 = vmatprep.subr.mxu0 0.0
    %556 = vmatpush1.msra.mxu0 0.0
    %557 = vmatprep.subr.mxu0 0.0
    %558 = vmatpush1.msra.mxu0 0.0
    %559 = vmatprep.subr.mxu0 0.0
    %560 = vmatpush1.msra.mxu0 0.0
    %561 = vmatprep.subr.mxu0 0.0
    %562 = vmatpush1.msra.mxu0 0.0
    %563 = vmatprep.subr.mxu0 0.0
    %564 = vmatpush1.msra.mxu0 0.0
    %565 = vmatprep.mubr.f32.mxu0 0.0
    %566 = vmatmul.mubr.f32.gmra.mrb[0].mxu0 %v500
    %v567 = vpop.f32.mrb[0].mxu0
    %v568 = vadd.f32 %v266, %v567
    %v569 = vpop.f32.mrb[0].mxu0
    %v570 = vadd.f32 %v270, %v569
    %571 = vdwg.mxu0
    %v572 = vxor.u32 %v568, 2147483648
    %v573 = vmul.f32 %v572, 1.442695
    %v574 = vpow.pop %v573
    %v575 = vadd.f32 %v574, 1.0
    %v576 = vrcp.pop %v575
    %v577 = vmul.f32 1.0, %v576
    %v578 = vtanh.pop %v570
    %v579 = vxor.u32 %v570, 2147483648
    %v580 = vmul.f32 %v579, 1.442695
    %v581 = vpow.pop %v580
    %v582 = vadd.f32 %v581, 1.0
    %v583 = vrcp.pop %v582
    %v584 = vmul.f32 1.0, %v583
    %v585 = vmul.f32 %v577, %v363
    %v586 = vmul.f32 %v577, %v578
    %588 = vrot.lane.b32.xlu0 %v586, 64
    %v589 = vpop.permute.xlu0 %588
    %v591 = vadd.f32 %v585, %v589
    %v592 = vtanh.pop %v591
    %v593 = vmul.f32 %v584, %v592
    %595 = vrot.lane.b32.xlu0 %v593, 64
    %v596 = vpop.permute.xlu0 %595
    %598 = vst.msk [vmem:[#allocation2 + $0x1] sm:$0x1] %vm370, %v596
    %s599 = scalar_lea.vmem [#allocation4], 2
    %v600 = vld [vmem:[%s599] ss:$8 sm:$0x3]
    %v602 = vsel %vm134, %v499, 0
    %604 = vmatprep.subr.mxu0 %v85
    %605 = vmatpush1.msra.mxu0 %v84
    %606 = vmatprep.subr.mxu0 %v87
    %607 = vmatpush1.msra.mxu0 %v86
    %608 = vmatprep.subr.mxu0 %v89
    %609 = vmatpush1.msra.mxu0 %v88
    %610 = vmatprep.subr.mxu0 %v91
    %611 = vmatpush1.msra.mxu0 %v90
    %612 = vmatprep.subr.mxu0 %v93
    %613 = vmatpush1.msra.mxu0 %v92
    %614 = vmatprep.subr.mxu0 %v95
    %615 = vmatpush1.msra.mxu0 %v94
    %616 = vmatprep.subr.mxu0 %v97
    %617 = vmatpush1.msra.mxu0 %v96
    %618 = vmatprep.subr.mxu0 %v99
    %619 = vmatpush1.msra.mxu0 %v98
    %620 = vmatprep.subr.mxu0 0.0
    %621 = vmatpush1.msra.mxu0 0.0
    %622 = vmatprep.subr.mxu0 0.0
    %623 = vmatpush1.msra.mxu0 0.0
    %624 = vmatprep.subr.mxu0 0.0
    %625 = vmatpush1.msra.mxu0 0.0
    %626 = vmatprep.subr.mxu0 0.0
    %627 = vmatpush1.msra.mxu0 0.0
    %628 = vmatprep.subr.mxu0 0.0
    %629 = vmatpush1.msra.mxu0 0.0
    %630 = vmatprep.subr.mxu0 0.0
    %631 = vmatpush1.msra.mxu0 0.0
    %632 = vmatprep.subr.mxu0 0.0
    %633 = vmatpush1.msra.mxu0 0.0
    %634 = vmatprep.subr.mxu0 0.0
    %635 = vmatpush1.msra.mxu0 0.0
    %636 = vmatprep.subr.mxu0 0.0
    %637 = vmatpush1.msra.mxu0 0.0
    %638 = vmatprep.subr.mxu0 0.0
    %639 = vmatpush1.msra.mxu0 0.0
    %640 = vmatprep.subr.mxu0 0.0
    %641 = vmatpush1.msra.mxu0 0.0
    %642 = vmatprep.subr.mxu0 0.0
    %643 = vmatpush1.msra.mxu0 0.0
    %644 = vmatprep.subr.mxu0 0.0
    %645 = vmatpush1.msra.mxu0 0.0
    %646 = vmatprep.subr.mxu0 0.0
    %647 = vmatpush1.msra.mxu0 0.0
    %648 = vmatprep.subr.mxu0 0.0
    %649 = vmatpush1.msra.mxu0 0.0
    %650 = vmatprep.subr.mxu0 0.0
    %651 = vmatpush1.msra.mxu0 0.0
    %652 = vmatprep.subr.mxu0 0.0
    %653 = vmatpush1.msra.mxu0 0.0
    %654 = vmatprep.subr.mxu0 0.0
    %655 = vmatpush1.msra.mxu0 0.0
    %656 = vmatprep.subr.mxu0 0.0
    %657 = vmatpush1.msra.mxu0 0.0
    %658 = vmatprep.subr.mxu0 0.0
    %659 = vmatpush1.msra.mxu0 0.0
    %660 = vmatprep.subr.mxu0 0.0
    %661 = vmatpush1.msra.mxu0 0.0
    %662 = vmatprep.subr.mxu0 0.0
    %663 = vmatpush1.msra.mxu0 0.0
    %664 = vmatprep.subr.mxu0 0.0
    %665 = vmatpush1.msra.mxu0 0.0
    %666 = vmatprep.subr.mxu0 0.0
    %667 = vmatpush1.msra.mxu0 0.0
    %668 = vmatprep.mubr.f32.mxu0 0.0
    %669 = vmatmul.mubr.f32.gmra.mrb[0].mxu0 %v602
    %v670 = vpop.f32.mrb[0].mxu0
    %v671 = vadd.f32 0.0, %v670
    %v672 = vpop.f32.mrb[0].mxu0
    %v673 = vadd.f32 0.0, %v672
    %674 = vdwg.mxu0
    %v677 = vcombine.low %v671, %v673
    %v679 = vunpack.c.l.s4 1966171168
    %v680 = vunpack.c.0.s8 %v679
    %v681 = vlaneseq
    %v682 = vshrl.u32 %v681, 7
    %v683 = vsub.s32 %v680, %v682
    %v684 = vrot.slane %v677, %v683
    %v686 = vunpack.c.l.s4 1966171168
    %v687 = vunpack.c.0.s8 %v686
    %v688 = vlaneseq
    %v689 = vshrl.u32 %v688, 7
    %v690 = vsub.s32 %v687, %v689
    %v691 = vrot.slane %v684, %v690
    %v693 = vadd.f32 %v600, %v691
    %v694 = vxor.u32 %v693, 2147483648
    %v695 = vmul.f32 %v694, 1.442695
    %v696 = vpow.pop %v695
    %v697 = vadd.f32 %v696, 1.0
    %v698 = vrcp.pop %v697
    %v699 = vmul.f32 1.0, %v698
    %v701 = vrot.slane %v693, 1
    %v703 = vtanh.pop %v701
    %704 = vrot.lane.b32.xlu0 %v693, 64
    %v705 = vpop.permute.xlu0 %704
    %v706 = vrot.slane %v705, 1
    %v708 = vxor.u32 %v706, 2147483648
    %v709 = vmul.f32 %v708, 1.442695
    %v710 = vpow.pop %v709
    %v711 = vadd.f32 %v710, 1.0
    %v712 = vrcp.pop %v711
    %v713 = vmul.f32 1.0, %v712
    %v714 = vmul.f32 %v699, %v493
    %v715 = vmul.f32 %v699, %v703
    %717 = vrot.lane.b32.xlu0 %v715, 64
    %v718 = vpop.permute.xlu0 %717
    %v720 = vadd.f32 %v714, %v718
    %v721 = vtanh.pop %v720
    %723 = vrot.lane.b32.xlu0 %v721, 64
    %v724 = vpop.permute.xlu0 %723
    %v726 = vmul.f32 %v713, %v724
    %v727 = vsel %vm134, %v726, %v593
    %728 = vmatprep.subr.mxu0 %v101
    %729 = vmatpush1.msra.mxu0 %v100
    %730 = vmatprep.subr.mxu0 %v103
    %731 = vmatpush1.msra.mxu0 %v102
    %732 = vmatprep.subr.mxu0 %v105
    %733 = vmatpush1.msra.mxu0 %v104
    %734 = vmatprep.subr.mxu0 %v107
    %735 = vmatpush1.msra.mxu0 %v106
    %736 = vmatprep.subr.mxu0 %v109
    %737 = vmatpush1.msra.mxu0 %v108
    %738 = vmatprep.subr.mxu0 %v111
    %739 = vmatpush1.msra.mxu0 %v110
    %740 = vmatprep.subr.mxu0 %v113
    %741 = vmatpush1.msra.mxu0 %v112
    %742 = vmatprep.subr.mxu0 %v115
    %743 = vmatpush1.msra.mxu0 %v114
    %744 = vmatprep.subr.mxu0 %v117
    %745 = vmatpush1.msra.mxu0 %v116
    %746 = vmatprep.subr.mxu0 %v119
    %747 = vmatpush1.msra.mxu0 %v118
    %748 = vmatprep.subr.mxu0 %v121
    %749 = vmatpush1.msra.mxu0 %v120
    %750 = vmatprep.subr.mxu0 %v123
    %751 = vmatpush1.msra.mxu0 %v122
    %752 = vmatprep.subr.mxu0 %v125
    %753 = vmatpush1.msra.mxu0 %v124
    %754 = vmatprep.subr.mxu0 %v127
    %755 = vmatpush1.msra.mxu0 %v126
    %756 = vmatprep.subr.mxu0 %v129
    %757 = vmatpush1.msra.mxu0 %v128
    %758 = vmatprep.subr.mxu0 %v131
    %759 = vmatpush1.msra.mxu0 %v130
    %760 = vmatprep.subr.mxu0 0.0
    %761 = vmatpush1.msra.mxu0 0.0
    %762 = vmatprep.subr.mxu0 0.0
    %763 = vmatpush1.msra.mxu0 0.0
    %764 = vmatprep.subr.mxu0 0.0
    %765 = vmatpush1.msra.mxu0 0.0
    %766 = vmatprep.subr.mxu0 0.0
    %767 = vmatpush1.msra.mxu0 0.0
    %768 = vmatprep.subr.mxu0 0.0
    %769 = vmatpush1.msra.mxu0 0.0
    %770 = vmatprep.subr.mxu0 0.0
    %771 = vmatpush1.msra.mxu0 0.0
    %772 = vmatprep.subr.mxu0 0.0
    %773 = vmatpush1.msra.mxu0 0.0
    %774 = vmatprep.subr.mxu0 0.0
    %775 = vmatpush1.msra.mxu0 0.0
    %776 = vmatprep.subr.mxu0 0.0
    %777 = vmatpush1.msra.mxu0 0.0
    %778 = vmatprep.subr.mxu0 0.0
    %779 = vmatpush1.msra.mxu0 0.0
    %780 = vmatprep.subr.mxu0 0.0
    %781 = vmatpush1.msra.mxu0 0.0
    %782 = vmatprep.subr.mxu0 0.0
    %783 = vmatpush1.msra.mxu0 0.0
    %784 = vmatprep.subr.mxu0 0.0
    %785 = vmatpush1.msra.mxu0 0.0
    %786 = vmatprep.subr.mxu0 0.0
    %787 = vmatpush1.msra.mxu0 0.0
    %788 = vmatprep.subr.mxu0 0.0
    %789 = vmatpush1.msra.mxu0 0.0
    %790 = vmatprep.subr.mxu0 0.0
    %791 = vmatpush1.msra.mxu0 0.0
    %792 = vmatprep.mubr.f32.mxu0 0.0
    %793 = vmatmul.mubr.f32.gmra.mrb[0].mxu0 %v727
    %v794 = vpop.f32.mrb[0].mxu0
    %v795 = vadd.f32 %v266, %v794
    %v796 = vpop.f32.mrb[0].mxu0
    %v797 = vadd.f32 %v270, %v796
    %798 = vdwg.mxu0
    %v799 = vxor.u32 %v795, 2147483648
    %v800 = vmul.f32 %v799, 1.442695
    %v801 = vpow.pop %v800
    %v802 = vadd.f32 %v801, 1.0
    %v803 = vrcp.pop %v802
    %v804 = vmul.f32 1.0, %v803
    %v805 = vtanh.pop %v797
    %v806 = vxor.u32 %v797, 2147483648
    %v807 = vmul.f32 %v806, 1.442695
    %v808 = vpow.pop %v807
    %v809 = vadd.f32 %v808, 1.0
    %v810 = vrcp.pop %v809
    %v811 = vmul.f32 1.0, %v810
    %v812 = vmul.f32 %v804, %v591
    %v813 = vmul.f32 %v804, %v805
    %815 = vrot.lane.b32.xlu0 %v813, 64
    %v816 = vpop.permute.xlu0 %815
    %v818 = vadd.f32 %v812, %v816
    %v819 = vtanh.pop %v818
    %v820 = vmul.f32 %v811, %v819
    %822 = vrot.lane.b32.xlu0 %v820, 64
    %v823 = vpop.permute.xlu0 %822
    %825 = vst.msk [vmem:[#allocation2 + $0x2] sm:$0x1] %vm370, %v823
    %s826 = scalar_lea.vmem [#allocation4], 3
    %v827 = vld [vmem:[%s826] ss:$8 sm:$0x3]
    %v829 = vsel %vm134, %v726, 0
    %831 = vmatprep.subr.mxu0 %v85
    %832 = vmatpush1.msra.mxu0 %v84
    %833 = vmatprep.subr.mxu0 %v87
    %834 = vmatpush1.msra.mxu0 %v86
    %835 = vmatprep.subr.mxu0 %v89
    %836 = vmatpush1.msra.mxu0 %v88
    %837 = vmatprep.subr.mxu0 %v91
    %838 = vmatpush1.msra.mxu0 %v90
    %839 = vmatprep.subr.mxu0 %v93
    %840 = vmatpush1.msra.mxu0 %v92
    %841 = vmatprep.subr.mxu0 %v95
    %842 = vmatpush1.msra.mxu0 %v94
    %843 = vmatprep.subr.mxu0 %v97
    %844 = vmatpush1.msra.mxu0 %v96
    %845 = vmatprep.subr.mxu0 %v99
    %846 = vmatpush1.msra.mxu0 %v98
    %847 = vmatprep.subr.mxu0 0.0
    %848 = vmatpush1.msra.mxu0 0.0
    %849 = vmatprep.subr.mxu0 0.0
    %850 = vmatpush1.msra.mxu0 0.0
    %851 = vmatprep.subr.mxu0 0.0
    %852 = vmatpush1.msra.mxu0 0.0
    %853 = vmatprep.subr.mxu0 0.0
    %854 = vmatpush1.msra.mxu0 0.0
    %855 = vmatprep.subr.mxu0 0.0
    %856 = vmatpush1.msra.mxu0 0.0
    %857 = vmatprep.subr.mxu0 0.0
    %858 = vmatpush1.msra.mxu0 0.0
    %859 = vmatprep.subr.mxu0 0.0
    %860 = vmatpush1.msra.mxu0 0.0
    %861 = vmatprep.subr.mxu0 0.0
    %862 = vmatpush1.msra.mxu0 0.0
    %863 = vmatprep.subr.mxu0 0.0
    %864 = vmatpush1.msra.mxu0 0.0
    %865 = vmatprep.subr.mxu0 0.0
    %866 = vmatpush1.msra.mxu0 0.0
    %867 = vmatprep.subr.mxu0 0.0
    %868 = vmatpush1.msra.mxu0 0.0
    %869 = vmatprep.subr.mxu0 0.0
    %870 = vmatpush1.msra.mxu0 0.0
    %871 = vmatprep.subr.mxu0 0.0
    %872 = vmatpush1.msra.mxu0 0.0
    %873 = vmatprep.subr.mxu0 0.0
    %874 = vmatpush1.msra.mxu0 0.0
    %875 = vmatprep.subr.mxu0 0.0
    %876 = vmatpush1.msra.mxu0 0.0
    %877 = vmatprep.subr.mxu0 0.0
    %878 = vmatpush1.msra.mxu0 0.0
    %879 = vmatprep.subr.mxu0 0.0
    %880 = vmatpush1.msra.mxu0 0.0
    %881 = vmatprep.subr.mxu0 0.0
    %882 = vmatpush1.msra.mxu0 0.0
    %883 = vmatprep.subr.mxu0 0.0
    %884 = vmatpush1.msra.mxu0 0.0
    %885 = vmatprep.subr.mxu0 0.0
    %886 = vmatpush1.msra.mxu0 0.0
    %887 = vmatprep.subr.mxu0 0.0
    %888 = vmatpush1.msra.mxu0 0.0
    %889 = vmatprep.subr.mxu0 0.0
    %890 = vmatpush1.msra.mxu0 0.0
    %891 = vmatprep.subr.mxu0 0.0
    %892 = vmatpush1.msra.mxu0 0.0
    %893 = vmatprep.subr.mxu0 0.0
    %894 = vmatpush1.msra.mxu0 0.0
    %895 = vmatprep.mubr.f32.mxu0 0.0
    %896 = vmatmul.mubr.f32.gmra.mrb[0].mxu0 %v829
    %v897 = vpop.f32.mrb[0].mxu0
    %v898 = vadd.f32 0.0, %v897
    %v899 = vpop.f32.mrb[0].mxu0
    %v900 = vadd.f32 0.0, %v899
    %901 = vdwg.mxu0
    %v904 = vcombine.low %v898, %v900
    %v906 = vunpack.c.l.s4 1966171168
    %v907 = vunpack.c.0.s8 %v906
    %v908 = vlaneseq
    %v909 = vshrl.u32 %v908, 7
    %v910 = vsub.s32 %v907, %v909
    %v911 = vrot.slane %v904, %v910
    %v913 = vunpack.c.l.s4 1966171168
    %v914 = vunpack.c.0.s8 %v913
    %v915 = vlaneseq
    %v916 = vshrl.u32 %v915, 7
    %v917 = vsub.s32 %v914, %v916
    %v918 = vrot.slane %v911, %v917
    %v920 = vadd.f32 %v827, %v918
    %v921 = vxor.u32 %v920, 2147483648
    %v922 = vmul.f32 %v921, 1.442695
    %v923 = vpow.pop %v922
    %v924 = vadd.f32 %v923, 1.0
    %v925 = vrcp.pop %v924
    %v926 = vmul.f32 1.0, %v925
    %v928 = vrot.slane %v920, 1
    %v930 = vtanh.pop %v928
    %931 = vrot.lane.b32.xlu0 %v920, 64
    %v932 = vpop.permute.xlu0 %931
    %v933 = vrot.slane %v932, 1
    %v935 = vxor.u32 %v933, 2147483648
    %v936 = vmul.f32 %v935, 1.442695
    %v937 = vpow.pop %v936
    %v938 = vadd.f32 %v937, 1.0
    %v939 = vrcp.pop %v938
    %v940 = vmul.f32 1.0, %v939
    %v941 = vmul.f32 %v926, %v720
    %v942 = vmul.f32 %v926, %v930
    %944 = vrot.lane.b32.xlu0 %v942, 64
    %v945 = vpop.permute.xlu0 %944
    %v947 = vadd.f32 %v941, %v945
    %v948 = vtanh.pop %v947
    %950 = vrot.lane.b32.xlu0 %v948, 64
    %v951 = vpop.permute.xlu0 %950
    %v953 = vmul.f32 %v940, %v951
    %v954 = vsel %vm134, %v953, %v820
    %955 = vmatprep.subr.mxu0 %v101
    %956 = vmatpush1.msra.mxu0 %v100
    %957 = vmatprep.subr.mxu0 %v103
    %958 = vmatpush1.msra.mxu0 %v102
    %959 = vmatprep.subr.mxu0 %v105
    %960 = vmatpush1.msra.mxu0 %v104
    %961 = vmatprep.subr.mxu0 %v107
    %962 = vmatpush1.msra.mxu0 %v106
    %963 = vmatprep.subr.mxu0 %v109
    %964 = vmatpush1.msra.mxu0 %v108
    %965 = vmatprep.subr.mxu0 %v111
    %966 = vmatpush1.msra.mxu0 %v110
    %967 = vmatprep.subr.mxu0 %v113
    %968 = vmatpush1.msra.mxu0 %v112
    %969 = vmatprep.subr.mxu0 %v115
    %970 = vmatpush1.msra.mxu0 %v114
    %971 = vmatprep.subr.mxu0 %v117
    %972 = vmatpush1.msra.mxu0 %v116
    %973 = vmatprep.subr.mxu0 %v119
    %974 = vmatpush1.msra.mxu0 %v118
    %975 = vmatprep.subr.mxu0 %v121
    %976 = vmatpush1.msra.mxu0 %v120
    %977 = vmatprep.subr.mxu0 %v123
    %978 = vmatpush1.msra.mxu0 %v122
    %979 = vmatprep.subr.mxu0 %v125
    %980 = vmatpush1.msra.mxu0 %v124
    %981 = vmatprep.subr.mxu0 %v127
    %982 = vmatpush1.msra.mxu0 %v126
    %983 = vmatprep.subr.mxu0 %v129
    %984 = vmatpush1.msra.mxu0 %v128
    %985 = vmatprep.subr.mxu0 %v131
    %986 = vmatpush1.msra.mxu0 %v130
    %987 = vmatprep.subr.mxu0 0.0
    %988 = vmatpush1.msra.mxu0 0.0
    %989 = vmatprep.subr.mxu0 0.0
    %990 = vmatpush1.msra.mxu0 0.0
    %991 = vmatprep.subr.mxu0 0.0
    %992 = vmatpush1.msra.mxu0 0.0
    %993 = vmatprep.subr.mxu0 0.0
    %994 = vmatpush1.msra.mxu0 0.0
    %995 = vmatprep.subr.mxu0 0.0
    %996 = vmatpush1.msra.mxu0 0.0
    %997 = vmatprep.subr.mxu0 0.0
    %998 = vmatpush1.msra.mxu0 0.0
    %999 = vmatprep.subr.mxu0 0.0
    %1000 = vmatpush1.msra.mxu0 0.0
    %1001 = vmatprep.subr.mxu0 0.0
    %1002 = vmatpush1.msra.mxu0 0.0
    %1003 = vmatprep.subr.mxu0 0.0
    %1004 = vmatpush1.msra.mxu0 0.0
    %1005 = vmatprep.subr.mxu0 0.0
    %1006 = vmatpush1.msra.mxu0 0.0
    %1007 = vmatprep.subr.mxu0 0.0
    %1008 = vmatpush1.msra.mxu0 0.0
    %1009 = vmatprep.subr.mxu0 0.0
    %1010 = vmatpush1.msra.mxu0 0.0
    %1011 = vmatprep.subr.mxu0 0.0
    %1012 = vmatpush1.msra.mxu0 0.0
    %1013 = vmatprep.subr.mxu0 0.0
    %1014 = vmatpush1.msra.mxu0 0.0
    %1015 = vmatprep.subr.mxu0 0.0
    %1016 = vmatpush1.msra.mxu0 0.0
    %1017 = vmatprep.subr.mxu0 0.0
    %1018 = vmatpush1.msra.mxu0 0.0
    %1019 = vmatprep.mubr.f32.mxu0 0.0
    %1020 = vmatmul.mubr.f32.gmra.mrb[0].mxu0 %v954
    %v1021 = vpop.f32.mrb[0].mxu0
    %v1022 = vadd.f32 %v266, %v1021
    %v1023 = vpop.f32.mrb[0].mxu0
    %v1024 = vadd.f32 %v270, %v1023
    %1025 = vdwg.mxu0
    %v1026 = vxor.u32 %v1022, 2147483648
    %v1027 = vmul.f32 %v1026, 1.442695
    %v1028 = vpow.pop %v1027
    %v1029 = vadd.f32 %v1028, 1.0
    %v1030 = vrcp.pop %v1029
    %v1031 = vmul.f32 1.0, %v1030
    %v1032 = vtanh.pop %v1024
    %v1033 = vxor.u32 %v1024, 2147483648
    %v1034 = vmul.f32 %v1033, 1.442695
    %v1035 = vpow.pop %v1034
    %v1036 = vadd.f32 %v1035, 1.0
    %v1037 = vrcp.pop %v1036
    %v1038 = vmul.f32 1.0, %v1037
    %v1039 = vmul.f32 %v1031, %v818
    %v1040 = vmul.f32 %v1031, %v1032
    %1042 = vrot.lane.b32.xlu0 %v1040, 64
    %v1043 = vpop.permute.xlu0 %1042
    %v1045 = vadd.f32 %v1039, %v1043
    %v1046 = vtanh.pop %v1045
    %v1047 = vmul.f32 %v1038, %v1046
    %1049 = vrot.lane.b32.xlu0 %v1047, 64
    %v1050 = vpop.permute.xlu0 %1049
    %1052 = vst.msk [vmem:[#allocation2 + $0x3] sm:$0x1] %vm370, %v1050
    %s1053 = scalar_lea.vmem [#allocation4], 4
    %v1054 = vld [vmem:[%s1053] ss:$8 sm:$0x3]
    %v1056 = vsel %vm134, %v953, 0
    %1058 = vmatprep.subr.mxu0 %v85
    %1059 = vmatpush1.msra.mxu0 %v84
    %1060 = vmatprep.subr.mxu0 %v87
    %1061 = vmatpush1.msra.mxu0 %v86
    %1062 = vmatprep.subr.mxu0 %v89
    %1063 = vmatpush1.msra.mxu0 %v88
    %1064 = vmatprep.subr.mxu0 %v91
    %1065 = vmatpush1.msra.mxu0 %v90
    %1066 = vmatprep.subr.mxu0 %v93
    %1067 = vmatpush1.msra.mxu0 %v92
    %1068 = vmatprep.subr.mxu0 %v95
    %1069 = vmatpush1.msra.mxu0 %v94
    %1070 = vmatprep.subr.mxu0 %v97
    %1071 = vmatpush1.msra.mxu0 %v96
    %1072 = vmatprep.subr.mxu0 %v99
    %1073 = vmatpush1.msra.mxu0 %v98
    %1074 = vmatprep.subr.mxu0 0.0
    %1075 = vmatpush1.msra.mxu0 0.0
    %1076 = vmatprep.subr.mxu0 0.0
    %1077 = vmatpush1.msra.mxu0 0.0
    %1078 = vmatprep.subr.mxu0 0.0
    %1079 = vmatpush1.msra.mxu0 0.0
    %1080 = vmatprep.subr.mxu0 0.0
    %1081 = vmatpush1.msra.mxu0 0.0
    %1082 = vmatprep.subr.mxu0 0.0
    %1083 = vmatpush1.msra.mxu0 0.0
    %1084 = vmatprep.subr.mxu0 0.0
    %1085 = vmatpush1.msra.mxu0 0.0
    %1086 = vmatprep.subr.mxu0 0.0
    %1087 = vmatpush1.msra.mxu0 0.0
    %1088 = vmatprep.subr.mxu0 0.0
    %1089 = vmatpush1.msra.mxu0 0.0
    %1090 = vmatprep.subr.mxu0 0.0
    %1091 = vmatpush1.msra.mxu0 0.0
    %1092 = vmatprep.subr.mxu0 0.0
    %1093 = vmatpush1.msra.mxu0 0.0
    %1094 = vmatprep.subr.mxu0 0.0
    %1095 = vmatpush1.msra.mxu0 0.0
    %1096 = vmatprep.subr.mxu0 0.0
    %1097 = vmatpush1.msra.mxu0 0.0
    %1098 = vmatprep.subr.mxu0 0.0
    %1099 = vmatpush1.msra.mxu0 0.0
    %1100 = vmatprep.subr.mxu0 0.0
    %1101 = vmatpush1.msra.mxu0 0.0
    %1102 = vmatprep.subr.mxu0 0.0
    %1103 = vmatpush1.msra.mxu0 0.0
    %1104 = vmatprep.subr.mxu0 0.0
    %1105 = vmatpush1.msra.mxu0 0.0
    %1106 = vmatprep.subr.mxu0 0.0
    %1107 = vmatpush1.msra.mxu0 0.0
    %1108 = vmatprep.subr.mxu0 0.0
    %1109 = vmatpush1.msra.mxu0 0.0
    %1110 = vmatprep.subr.mxu0 0.0
    %1111 = vmatpush1.msra.mxu0 0.0
    %1112 = vmatprep.subr.mxu0 0.0
    %1113 = vmatpush1.msra.mxu0 0.0
    %1114 = vmatprep.subr.mxu0 0.0
    %1115 = vmatpush1.msra.mxu0 0.0
    %1116 = vmatprep.subr.mxu0 0.0
    %1117 = vmatpush1.msra.mxu0 0.0
    %1118 = vmatprep.subr.mxu0 0.0
    %1119 = vmatpush1.msra.mxu0 0.0
    %1120 = vmatprep.subr.mxu0 0.0
    %1121 = vmatpush1.msra.mxu0 0.0
    %1122 = vmatprep.mubr.f32.mxu0 0.0
    %1123 = vmatmul.mubr.f32.gmra.mrb[0].mxu0 %v1056
    %v1124 = vpop.f32.mrb[0].mxu0
    %v1125 = vadd.f32 0.0, %v1124
    %v1126 = vpop.f32.mrb[0].mxu0
    %v1127 = vadd.f32 0.0, %v1126
    %1128 = vdwg.mxu0
    %v1131 = vcombine.low %v1125, %v1127
    %v1133 = vunpack.c.l.s4 1966171168
    %v1134 = vunpack.c.0.s8 %v1133
    %v1135 = vlaneseq
    %v1136 = vshrl.u32 %v1135, 7
    %v1137 = vsub.s32 %v1134, %v1136
    %v1138 = vrot.slane %v1131, %v1137
    %v1140 = vunpack.c.l.s4 1966171168
    %v1141 = vunpack.c.0.s8 %v1140
    %v1142 = vlaneseq
    %v1143 = vshrl.u32 %v1142, 7
    %v1144 = vsub.s32 %v1141, %v1143
    %v1145 = vrot.slane %v1138, %v1144
    %v1147 = vadd.f32 %v1054, %v1145
    %v1148 = vxor.u32 %v1147, 2147483648
    %v1149 = vmul.f32 %v1148, 1.442695
    %v1150 = vpow.pop %v1149
    %v1151 = vadd.f32 %v1150, 1.0
    %v1152 = vrcp.pop %v1151
    %v1153 = vmul.f32 1.0, %v1152
    %v1155 = vrot.slane %v1147, 1
    %v1157 = vtanh.pop %v1155
    %1158 = vrot.lane.b32.xlu0 %v1147, 64
    %v1159 = vpop.permute.xlu0 %1158
    %v1160 = vrot.slane %v1159, 1
    %v1162 = vxor.u32 %v1160, 2147483648
    %v1163 = vmul.f32 %v1162, 1.442695
    %v1164 = vpow.pop %v1163
    %v1165 = vadd.f32 %v1164, 1.0
    %v1166 = vrcp.pop %v1165
    %v1167 = vmul.f32 1.0, %v1166
    %v1168 = vmul.f32 %v1153, %v947
    %v1169 = vmul.f32 %v1153, %v1157
    %1171 = vrot.lane.b32.xlu0 %v1169, 64
    %v1172 = vpop.permute.xlu0 %1171
    %v1174 = vadd.f32 %v1168, %v1172
    %v1175 = vtanh.pop %v1174
    %1177 = vrot.lane.b32.xlu0 %v1175, 64
    %v1178 = vpop.permute.xlu0 %1177
    %v1180 = vmul.f32 %v1167, %v1178
    %v1181 = vsel %vm134, %v1180, %v1047
    %1182 = vmatprep.subr.mxu0 %v101
    %1183 = vmatpush1.msra.mxu0 %v100
    %1184 = vmatprep.subr.mxu0 %v103
    %1185 = vmatpush1.msra.mxu0 %v102
    %1186 = vmatprep.subr.mxu0 %v105
    %1187 = vmatpush1.msra.mxu0 %v104
    %1188 = vmatprep.subr.mxu0 %v107
    %1189 = vmatpush1.msra.mxu0 %v106
    %1190 = vmatprep.subr.mxu0 %v109
    %1191 = vmatpush1.msra.mxu0 %v108
    %1192 = vmatprep.subr.mxu0 %v111
    %1193 = vmatpush1.msra.mxu0 %v110
    %1194 = vmatprep.subr.mxu0 %v113
    %1195 = vmatpush1.msra.mxu0 %v112
    %1196 = vmatprep.subr.mxu0 %v115
    %1197 = vmatpush1.msra.mxu0 %v114
    %1198 = vmatprep.subr.mxu0 %v117
    %1199 = vmatpush1.msra.mxu0 %v116
    %1200 = vmatprep.subr.mxu0 %v119
    %1201 = vmatpush1.msra.mxu0 %v118
    %1202 = vmatprep.subr.mxu0 %v121
    %1203 = vmatpush1.msra.mxu0 %v120
    %1204 = vmatprep.subr.mxu0 %v123
    %1205 = vmatpush1.msra.mxu0 %v122
    %1206 = vmatprep.subr.mxu0 %v125
    %1207 = vmatpush1.msra.mxu0 %v124
    %1208 = vmatprep.subr.mxu0 %v127
    %1209 = vmatpush1.msra.mxu0 %v126
    %1210 = vmatprep.subr.mxu0 %v129
    %1211 = vmatpush1.msra.mxu0 %v128
    %1212 = vmatprep.subr.mxu0 %v131
    %1213 = vmatpush1.msra.mxu0 %v130
    %1214 = vmatprep.subr.mxu0 0.0
    %1215 = vmatpush1.msra.mxu0 0.0
    %1216 = vmatprep.subr.mxu0 0.0
    %1217 = vmatpush1.msra.mxu0 0.0
    %1218 = vmatprep.subr.mxu0 0.0
    %1219 = vmatpush1.msra.mxu0 0.0
    %1220 = vmatprep.subr.mxu0 0.0
    %1221 = vmatpush1.msra.mxu0 0.0
    %1222 = vmatprep.subr.mxu0 0.0
    %1223 = vmatpush1.msra.mxu0 0.0
    %1224 = vmatprep.subr.mxu0 0.0
    %1225 = vmatpush1.msra.mxu0 0.0
    %1226 = vmatprep.subr.mxu0 0.0
    %1227 = vmatpush1.msra.mxu0 0.0
    %1228 = vmatprep.subr.mxu0 0.0
    %1229 = vmatpush1.msra.mxu0 0.0
    %1230 = vmatprep.subr.mxu0 0.0
    %1231 = vmatpush1.msra.mxu0 0.0
    %1232 = vmatprep.subr.mxu0 0.0
    %1233 = vmatpush1.msra.mxu0 0.0
    %1234 = vmatprep.subr.mxu0 0.0
    %1235 = vmatpush1.msra.mxu0 0.0
    %1236 = vmatprep.subr.mxu0 0.0
    %1237 = vmatpush1.msra.mxu0 0.0
    %1238 = vmatprep.subr.mxu0 0.0
    %1239 = vmatpush1.msra.mxu0 0.0
    %1240 = vmatprep.subr.mxu0 0.0
    %1241 = vmatpush1.msra.mxu0 0.0
    %1242 = vmatprep.subr.mxu0 0.0
    %1243 = vmatpush1.msra.mxu0 0.0
    %1244 = vmatprep.subr.mxu0 0.0
    %1245 = vmatpush1.msra.mxu0 0.0
    %1246 = vmatprep.mubr.f32.mxu0 0.0
    %1247 = vmatmul.mubr.f32.gmra.mrb[0].mxu0 %v1181
    %v1248 = vpop.f32.mrb[0].mxu0
    %v1249 = vadd.f32 %v266, %v1248
    %v1250 = vpop.f32.mrb[0].mxu0
    %v1251 = vadd.f32 %v270, %v1250
    %1252 = vdwg.mxu0
    %v1253 = vxor.u32 %v1249, 2147483648
    %v1254 = vmul.f32 %v1253, 1.442695
    %v1255 = vpow.pop %v1254
    %v1256 = vadd.f32 %v1255, 1.0
    %v1257 = vrcp.pop %v1256
    %v1258 = vmul.f32 1.0, %v1257
    %v1259 = vtanh.pop %v1251
    %v1260 = vxor.u32 %v1251, 2147483648
    %v1261 = vmul.f32 %v1260, 1.442695
    %v1262 = vpow.pop %v1261
    %v1263 = vadd.f32 %v1262, 1.0
    %v1264 = vrcp.pop %v1263
    %v1265 = vmul.f32 1.0, %v1264
    %v1266 = vmul.f32 %v1258, %v1045
    %v1267 = vmul.f32 %v1258, %v1259
    %1269 = vrot.lane.b32.xlu0 %v1267, 64
    %v1270 = vpop.permute.xlu0 %1269
    %v1272 = vadd.f32 %v1266, %v1270
    %v1273 = vtanh.pop %v1272
    %v1274 = vmul.f32 %v1265, %v1273
    %1276 = vrot.lane.b32.xlu0 %v1274, 64
    %v1277 = vpop.permute.xlu0 %1276
    %1279 = vst.msk [vmem:[#allocation2 + $0x4] sm:$0x1] %vm370, %v1277
    %s1280 = scalar_lea.vmem [#allocation4], 5
    %v1281 = vld [vmem:[%s1280] ss:$8 sm:$0x3]
    %v1283 = vsel %vm134, %v1180, 0
    %1285 = vmatprep.subr.mxu0 %v85
    %1286 = vmatpush1.msra.mxu0 %v84
    %1287 = vmatprep.subr.mxu0 %v87
    %1288 = vmatpush1.msra.mxu0 %v86
    %1289 = vmatprep.subr.mxu0 %v89
    %1290 = vmatpush1.msra.mxu0 %v88
    %1291 = vmatprep.subr.mxu0 %v91
    %1292 = vmatpush1.msra.mxu0 %v90
    %1293 = vmatprep.subr.mxu0 %v93
    %1294 = vmatpush1.msra.mxu0 %v92
    %1295 = vmatprep.subr.mxu0 %v95
    %1296 = vmatpush1.msra.mxu0 %v94
    %1297 = vmatprep.subr.mxu0 %v97
    %1298 = vmatpush1.msra.mxu0 %v96
    %1299 = vmatprep.subr.mxu0 %v99
    %1300 = vmatpush1.msra.mxu0 %v98
    %1301 = vmatprep.subr.mxu0 0.0
    %1302 = vmatpush1.msra.mxu0 0.0
    %1303 = vmatprep.subr.mxu0 0.0
    %1304 = vmatpush1.msra.mxu0 0.0
    %1305 = vmatprep.subr.mxu0 0.0
    %1306 = vmatpush1.msra.mxu0 0.0
    %1307 = vmatprep.subr.mxu0 0.0
    %1308 = vmatpush1.msra.mxu0 0.0
    %1309 = vmatprep.subr.mxu0 0.0
    %1310 = vmatpush1.msra.mxu0 0.0
    %1311 = vmatprep.subr.mxu0 0.0
    %1312 = vmatpush1.msra.mxu0 0.0
    %1313 = vmatprep.subr.mxu0 0.0
    %1314 = vmatpush1.msra.mxu0 0.0
    %1315 = vmatprep.subr.mxu0 0.0
    %1316 = vmatpush1.msra.mxu0 0.0
    %1317 = vmatprep.subr.mxu0 0.0
    %1318 = vmatpush1.msra.mxu0 0.0
    %1319 = vmatprep.subr.mxu0 0.0
    %1320 = vmatpush1.msra.mxu0 0.0
    %1321 = vmatprep.subr.mxu0 0.0
    %1322 = vmatpush1.msra.mxu0 0.0
    %1323 = vmatprep.subr.mxu0 0.0
    %1324 = vmatpush1.msra.mxu0 0.0
    %1325 = vmatprep.subr.mxu0 0.0
    %1326 = vmatpush1.msra.mxu0 0.0
    %1327 = vmatprep.subr.mxu0 0.0
    %1328 = vmatpush1.msra.mxu0 0.0
    %1329 = vmatprep.subr.mxu0 0.0
    %1330 = vmatpush1.msra.mxu0 0.0
    %1331 = vmatprep.subr.mxu0 0.0
    %1332 = vmatpush1.msra.mxu0 0.0
    %1333 = vmatprep.subr.mxu0 0.0
    %1334 = vmatpush1.msra.mxu0 0.0
    %1335 = vmatprep.subr.mxu0 0.0
    %1336 = vmatpush1.msra.mxu0 0.0
    %1337 = vmatprep.subr.mxu0 0.0
    %1338 = vmatpush1.msra.mxu0 0.0
    %1339 = vmatprep.subr.mxu0 0.0
    %1340 = vmatpush1.msra.mxu0 0.0
    %1341 = vmatprep.subr.mxu0 0.0
    %1342 = vmatpush1.msra.mxu0 0.0
    %1343 = vmatprep.subr.mxu0 0.0
    %1344 = vmatpush1.msra.mxu0 0.0
    %1345 = vmatprep.subr.mxu0 0.0
    %1346 = vmatpush1.msra.mxu0 0.0
    %1347 = vmatprep.subr.mxu0 0.0
    %1348 = vmatpush1.msra.mxu0 0.0
    %1349 = vmatprep.mubr.f32.mxu0 0.0
    %1350 = vmatmul.mubr.f32.gmra.mrb[0].mxu0 %v1283
    %v1351 = vpop.f32.mrb[0].mxu0
    %v1352 = vadd.f32 0.0, %v1351
    %v1353 = vpop.f32.mrb[0].mxu0
    %v1354 = vadd.f32 0.0, %v1353
    %1355 = vdwg.mxu0
    %v1358 = vcombine.low %v1352, %v1354
    %v1360 = vunpack.c.l.s4 1966171168
    %v1361 = vunpack.c.0.s8 %v1360
    %v1362 = vlaneseq
    %v1363 = vshrl.u32 %v1362, 7
    %v1364 = vsub.s32 %v1361, %v1363
    %v1365 = vrot.slane %v1358, %v1364
    %v1367 = vunpack.c.l.s4 1966171168
    %v1368 = vunpack.c.0.s8 %v1367
    %v1369 = vlaneseq
    %v1370 = vshrl.u32 %v1369, 7
    %v1371 = vsub.s32 %v1368, %v1370
    %v1372 = vrot.slane %v1365, %v1371
    %v1374 = vadd.f32 %v1281, %v1372
    %v1375 = vxor.u32 %v1374, 2147483648
    %v1376 = vmul.f32 %v1375, 1.442695
    %v1377 = vpow.pop %v1376
    %v1378 = vadd.f32 %v1377, 1.0
    %v1379 = vrcp.pop %v1378
    %v1380 = vmul.f32 1.0, %v1379
    %v1382 = vrot.slane %v1374, 1
    %v1384 = vtanh.pop %v1382
    %1385 = vrot.lane.b32.xlu0 %v1374, 64
    %v1386 = vpop.permute.xlu0 %1385
    %v1387 = vrot.slane %v1386, 1
    %v1389 = vxor.u32 %v1387, 2147483648
    %v1390 = vmul.f32 %v1389, 1.442695
    %v1391 = vpow.pop %v1390
    %v1392 = vadd.f32 %v1391, 1.0
    %v1393 = vrcp.pop %v1392
    %v1394 = vmul.f32 1.0, %v1393
    %v1395 = vmul.f32 %v1380, %v1174
    %v1396 = vmul.f32 %v1380, %v1384
    %1398 = vrot.lane.b32.xlu0 %v1396, 64
    %v1399 = vpop.permute.xlu0 %1398
    %v1401 = vadd.f32 %v1395, %v1399
    %v1402 = vtanh.pop %v1401
    %1404 = vrot.lane.b32.xlu0 %v1402, 64
    %v1405 = vpop.permute.xlu0 %1404
    %v1407 = vmul.f32 %v1394, %v1405
    %v1408 = vsel %vm134, %v1407, %v1274
    %1409 = vmatprep.subr.mxu0 %v101
    %1410 = vmatpush1.msra.mxu0 %v100
    %1411 = vmatprep.subr.mxu0 %v103
    %1412 = vmatpush1.msra.mxu0 %v102
    %1413 = vmatprep.subr.mxu0 %v105
    %1414 = vmatpush1.msra.mxu0 %v104
    %1415 = vmatprep.subr.mxu0 %v107
    %1416 = vmatpush1.msra.mxu0 %v106
    %1417 = vmatprep.subr.mxu0 %v109
    %1418 = vmatpush1.msra.mxu0 %v108
    %1419 = vmatprep.subr.mxu0 %v111
    %1420 = vmatpush1.msra.mxu0 %v110
    %1421 = vmatprep.subr.mxu0 %v113
    %1422 = vmatpush1.msra.mxu0 %v112
    %1423 = vmatprep.subr.mxu0 %v115
    %1424 = vmatpush1.msra.mxu0 %v114
    %1425 = vmatprep.subr.mxu0 %v117
    %1426 = vmatpush1.msra.mxu0 %v116
    %1427 = vmatprep.subr.mxu0 %v119
    %1428 = vmatpush1.msra.mxu0 %v118
    %1429 = vmatprep.subr.mxu0 %v121
    %1430 = vmatpush1.msra.mxu0 %v120
    %1431 = vmatprep.subr.mxu0 %v123
    %1432 = vmatpush1.msra.mxu0 %v122
    %1433 = vmatprep.subr.mxu0 %v125
    %1434 = vmatpush1.msra.mxu0 %v124
    %1435 = vmatprep.subr.mxu0 %v127
    %1436 = vmatpush1.msra.mxu0 %v126
    %1437 = vmatprep.subr.mxu0 %v129
    %1438 = vmatpush1.msra.mxu0 %v128
    %1439 = vmatprep.subr.mxu0 %v131
    %1440 = vmatpush1.msra.mxu0 %v130
    %1441 = vmatprep.subr.mxu0 0.0
    %1442 = vmatpush1.msra.mxu0 0.0
    %1443 = vmatprep.subr.mxu0 0.0
    %1444 = vmatpush1.msra.mxu0 0.0
    %1445 = vmatprep.subr.mxu0 0.0
    %1446 = vmatpush1.msra.mxu0 0.0
    %1447 = vmatprep.subr.mxu0 0.0
    %1448 = vmatpush1.msra.mxu0 0.0
    %1449 = vmatprep.subr.mxu0 0.0
    %1450 = vmatpush1.msra.mxu0 0.0
    %1451 = vmatprep.subr.mxu0 0.0
    %1452 = vmatpush1.msra.mxu0 0.0
    %1453 = vmatprep.subr.mxu0 0.0
    %1454 = vmatpush1.msra.mxu0 0.0
    %1455 = vmatprep.subr.mxu0 0.0
    %1456 = vmatpush1.msra.mxu0 0.0
    %1457 = vmatprep.subr.mxu0 0.0
    %1458 = vmatpush1.msra.mxu0 0.0
    %1459 = vmatprep.subr.mxu0 0.0
    %1460 = vmatpush1.msra.mxu0 0.0
    %1461 = vmatprep.subr.mxu0 0.0
    %1462 = vmatpush1.msra.mxu0 0.0
    %1463 = vmatprep.subr.mxu0 0.0
    %1464 = vmatpush1.msra.mxu0 0.0
    %1465 = vmatprep.subr.mxu0 0.0
    %1466 = vmatpush1.msra.mxu0 0.0
    %1467 = vmatprep.subr.mxu0 0.0
    %1468 = vmatpush1.msra.mxu0 0.0
    %1469 = vmatprep.subr.mxu0 0.0
    %1470 = vmatpush1.msra.mxu0 0.0
    %1471 = vmatprep.subr.mxu0 0.0
    %1472 = vmatpush1.msra.mxu0 0.0
    %1473 = vmatprep.mubr.f32.mxu0 0.0
    %1474 = vmatmul.mubr.f32.gmra.mrb[0].mxu0 %v1408
    %v1475 = vpop.f32.mrb[0].mxu0
    %v1476 = vadd.f32 %v266, %v1475
    %v1477 = vpop.f32.mrb[0].mxu0
    %v1478 = vadd.f32 %v270, %v1477
    %1479 = vdwg.mxu0
    %v1480 = vxor.u32 %v1476, 2147483648
    %v1481 = vmul.f32 %v1480, 1.442695
    %v1482 = vpow.pop %v1481
    %v1483 = vadd.f32 %v1482, 1.0
    %v1484 = vrcp.pop %v1483
    %v1485 = vmul.f32 1.0, %v1484
    %v1486 = vtanh.pop %v1478
    %v1487 = vxor.u32 %v1478, 2147483648
    %v1488 = vmul.f32 %v1487, 1.442695
    %v1489 = vpow.pop %v1488
    %v1490 = vadd.f32 %v1489, 1.0
    %v1491 = vrcp.pop %v1490
    %v1492 = vmul.f32 1.0, %v1491
    %v1493 = vmul.f32 %v1485, %v1272
    %v1494 = vmul.f32 %v1485, %v1486
    %1496 = vrot.lane.b32.xlu0 %v1494, 64
    %v1497 = vpop.permute.xlu0 %1496
    %v1499 = vadd.f32 %v1493, %v1497
    %v1500 = vtanh.pop %v1499
    %v1501 = vmul.f32 %v1492, %v1500
    %1503 = vrot.lane.b32.xlu0 %v1501, 64
    %v1504 = vpop.permute.xlu0 %1503
    %1506 = vst.msk [vmem:[#allocation2 + $0x5] sm:$0x1] %vm370, %v1504
    %s1507 = scalar_lea.vmem [#allocation4], 6
    %v1508 = vld [vmem:[%s1507] ss:$8 sm:$0x3]
    %v1510 = vsel %vm134, %v1407, 0
    %1512 = vmatprep.subr.mxu0 %v85
    %1513 = vmatpush1.msra.mxu0 %v84
    %1514 = vmatprep.subr.mxu0 %v87
    %1515 = vmatpush1.msra.mxu0 %v86
    %1516 = vmatprep.subr.mxu0 %v89
    %1517 = vmatpush1.msra.mxu0 %v88
    %1518 = vmatprep.subr.mxu0 %v91
    %1519 = vmatpush1.msra.mxu0 %v90
    %1520 = vmatprep.subr.mxu0 %v93
    %1521 = vmatpush1.msra.mxu0 %v92
    %1522 = vmatprep.subr.mxu0 %v95
    %1523 = vmatpush1.msra.mxu0 %v94
    %1524 = vmatprep.subr.mxu0 %v97
    %1525 = vmatpush1.msra.mxu0 %v96
    %1526 = vmatprep.subr.mxu0 %v99
    %1527 = vmatpush1.msra.mxu0 %v98
    %1528 = vmatprep.subr.mxu0 0.0
    %1529 = vmatpush1.msra.mxu0 0.0
    %1530 = vmatprep.subr.mxu0 0.0
    %1531 = vmatpush1.msra.mxu0 0.0
    %1532 = vmatprep.subr.mxu0 0.0
    %1533 = vmatpush1.msra.mxu0 0.0
    %1534 = vmatprep.subr.mxu0 0.0
    %1535 = vmatpush1.msra.mxu0 0.0
    %1536 = vmatprep.subr.mxu0 0.0
    %1537 = vmatpush1.msra.mxu0 0.0
    %1538 = vmatprep.subr.mxu0 0.0
    %1539 = vmatpush1.msra.mxu0 0.0
    %1540 = vmatprep.subr.mxu0 0.0
    %1541 = vmatpush1.msra.mxu0 0.0
    %1542 = vmatprep.subr.mxu0 0.0
    %1543 = vmatpush1.msra.mxu0 0.0
    %1544 = vmatprep.subr.mxu0 0.0
    %1545 = vmatpush1.msra.mxu0 0.0
    %1546 = vmatprep.subr.mxu0 0.0
    %1547 = vmatpush1.msra.mxu0 0.0
    %1548 = vmatprep.subr.mxu0 0.0
    %1549 = vmatpush1.msra.mxu0 0.0
    %1550 = vmatprep.subr.mxu0 0.0
    %1551 = vmatpush1.msra.mxu0 0.0
    %1552 = vmatprep.subr.mxu0 0.0
    %1553 = vmatpush1.msra.mxu0 0.0
    %1554 = vmatprep.subr.mxu0 0.0
    %1555 = vmatpush1.msra.mxu0 0.0
    %1556 = vmatprep.subr.mxu0 0.0
    %1557 = vmatpush1.msra.mxu0 0.0
    %1558 = vmatprep.subr.mxu0 0.0
    %1559 = vmatpush1.msra.mxu0 0.0
    %1560 = vmatprep.subr.mxu0 0.0
    %1561 = vmatpush1.msra.mxu0 0.0
    %1562 = vmatprep.subr.mxu0 0.0
    %1563 = vmatpush1.msra.mxu0 0.0
    %1564 = vmatprep.subr.mxu0 0.0
    %1565 = vmatpush1.msra.mxu0 0.0
    %1566 = vmatprep.subr.mxu0 0.0
    %1567 = vmatpush1.msra.mxu0 0.0
    %1568 = vmatprep.subr.mxu0 0.0
    %1569 = vmatpush1.msra.mxu0 0.0
    %1570 = vmatprep.subr.mxu0 0.0
    %1571 = vmatpush1.msra.mxu0 0.0
    %1572 = vmatprep.subr.mxu0 0.0
    %1573 = vmatpush1.msra.mxu0 0.0
    %1574 = vmatprep.subr.mxu0 0.0
    %1575 = vmatpush1.msra.mxu0 0.0
    %1576 = vmatprep.mubr.f32.mxu0 0.0
    %1577 = vmatmul.mubr.f32.gmra.mrb[0].mxu0 %v1510
    %v1578 = vpop.f32.mrb[0].mxu0
    %v1579 = vadd.f32 0.0, %v1578
    %v1580 = vpop.f32.mrb[0].mxu0
    %v1581 = vadd.f32 0.0, %v1580
    %1582 = vdwg.mxu0
    %v1585 = vcombine.low %v1579, %v1581
    %v1587 = vunpack.c.l.s4 1966171168
    %v1588 = vunpack.c.0.s8 %v1587
    %v1589 = vlaneseq
    %v1590 = vshrl.u32 %v1589, 7
    %v1591 = vsub.s32 %v1588, %v1590
    %v1592 = vrot.slane %v1585, %v1591
    %v1594 = vunpack.c.l.s4 1966171168
    %v1595 = vunpack.c.0.s8 %v1594
    %v1596 = vlaneseq
    %v1597 = vshrl.u32 %v1596, 7
    %v1598 = vsub.s32 %v1595, %v1597
    %v1599 = vrot.slane %v1592, %v1598
    %v1601 = vadd.f32 %v1508, %v1599
    %v1602 = vxor.u32 %v1601, 2147483648
    %v1603 = vmul.f32 %v1602, 1.442695
    %v1604 = vpow.pop %v1603
    %v1605 = vadd.f32 %v1604, 1.0
    %v1606 = vrcp.pop %v1605
    %v1607 = vmul.f32 1.0, %v1606
    %v1609 = vrot.slane %v1601, 1
    %v1611 = vtanh.pop %v1609
    %1612 = vrot.lane.b32.xlu0 %v1601, 64
    %v1613 = vpop.permute.xlu0 %1612
    %v1614 = vrot.slane %v1613, 1
    %v1616 = vxor.u32 %v1614, 2147483648
    %v1617 = vmul.f32 %v1616, 1.442695
    %v1618 = vpow.pop %v1617
    %v1619 = vadd.f32 %v1618, 1.0
    %v1620 = vrcp.pop %v1619
    %v1621 = vmul.f32 1.0, %v1620
    %v1622 = vmul.f32 %v1607, %v1401
    %v1623 = vmul.f32 %v1607, %v1611
    %1625 = vrot.lane.b32.xlu0 %v1623, 64
    %v1626 = vpop.permute.xlu0 %1625
    %v1628 = vadd.f32 %v1622, %v1626
    %v1629 = vtanh.pop %v1628
    %1631 = vrot.lane.b32.xlu0 %v1629, 64
    %v1632 = vpop.permute.xlu0 %1631
    %v1634 = vmul.f32 %v1621, %v1632
    %v1635 = vsel %vm134, %v1634, %v1501
    %1636 = vmatprep.subr.mxu0 %v101
    %1637 = vmatpush1.msra.mxu0 %v100
    %1638 = vmatprep.subr.mxu0 %v103
    %1639 = vmatpush1.msra.mxu0 %v102
    %1640 = vmatprep.subr.mxu0 %v105
    %1641 = vmatpush1.msra.mxu0 %v104
    %1642 = vmatprep.subr.mxu0 %v107
    %1643 = vmatpush1.msra.mxu0 %v106
    %1644 = vmatprep.subr.mxu0 %v109
    %1645 = vmatpush1.msra.mxu0 %v108
    %1646 = vmatprep.subr.mxu0 %v111
    %1647 = vmatpush1.msra.mxu0 %v110
    %1648 = vmatprep.subr.mxu0 %v113
    %1649 = vmatpush1.msra.mxu0 %v112
    %1650 = vmatprep.subr.mxu0 %v115
    %1651 = vmatpush1.msra.mxu0 %v114
    %1652 = vmatprep.subr.mxu0 %v117
    %1653 = vmatpush1.msra.mxu0 %v116
    %1654 = vmatprep.subr.mxu0 %v119
    %1655 = vmatpush1.msra.mxu0 %v118
    %1656 = vmatprep.subr.mxu0 %v121
    %1657 = vmatpush1.msra.mxu0 %v120
    %1658 = vmatprep.subr.mxu0 %v123
    %1659 = vmatpush1.msra.mxu0 %v122
    %1660 = vmatprep.subr.mxu0 %v125
    %1661 = vmatpush1.msra.mxu0 %v124
    %1662 = vmatprep.subr.mxu0 %v127
    %1663 = vmatpush1.msra.mxu0 %v126
    %1664 = vmatprep.subr.mxu0 %v129
    %1665 = vmatpush1.msra.mxu0 %v128
    %1666 = vmatprep.subr.mxu0 %v131
    %1667 = vmatpush1.msra.mxu0 %v130
    %1668 = vmatprep.subr.mxu0 0.0
    %1669 = vmatpush1.msra.mxu0 0.0
    %1670 = vmatprep.subr.mxu0 0.0
    %1671 = vmatpush1.msra.mxu0 0.0
    %1672 = vmatprep.subr.mxu0 0.0
    %1673 = vmatpush1.msra.mxu0 0.0
    %1674 = vmatprep.subr.mxu0 0.0
    %1675 = vmatpush1.msra.mxu0 0.0
    %1676 = vmatprep.subr.mxu0 0.0
    %1677 = vmatpush1.msra.mxu0 0.0
    %1678 = vmatprep.subr.mxu0 0.0
    %1679 = vmatpush1.msra.mxu0 0.0
    %1680 = vmatprep.subr.mxu0 0.0
    %1681 = vmatpush1.msra.mxu0 0.0
    %1682 = vmatprep.subr.mxu0 0.0
    %1683 = vmatpush1.msra.mxu0 0.0
    %1684 = vmatprep.subr.mxu0 0.0
    %1685 = vmatpush1.msra.mxu0 0.0
    %1686 = vmatprep.subr.mxu0 0.0
    %1687 = vmatpush1.msra.mxu0 0.0
    %1688 = vmatprep.subr.mxu0 0.0
    %1689 = vmatpush1.msra.mxu0 0.0
    %1690 = vmatprep.subr.mxu0 0.0
    %1691 = vmatpush1.msra.mxu0 0.0
    %1692 = vmatprep.subr.mxu0 0.0
    %1693 = vmatpush1.msra.mxu0 0.0
    %1694 = vmatprep.subr.mxu0 0.0
    %1695 = vmatpush1.msra.mxu0 0.0
    %1696 = vmatprep.subr.mxu0 0.0
    %1697 = vmatpush1.msra.mxu0 0.0
    %1698 = vmatprep.subr.mxu0 0.0
    %1699 = vmatpush1.msra.mxu0 0.0
    %1700 = vmatprep.mubr.f32.mxu0 0.0
    %1701 = vmatmul.mubr.f32.gmra.mrb[0].mxu0 %v1635
    %v1702 = vpop.f32.mrb[0].mxu0
    %v1703 = vadd.f32 %v266, %v1702
    %v1704 = vpop.f32.mrb[0].mxu0
    %v1705 = vadd.f32 %v270, %v1704
    %1706 = vdwg.mxu0
    %v1707 = vxor.u32 %v1703, 2147483648
    %v1708 = vmul.f32 %v1707, 1.442695
    %v1709 = vpow.pop %v1708
    %v1710 = vadd.f32 %v1709, 1.0
    %v1711 = vrcp.pop %v1710
    %v1712 = vmul.f32 1.0, %v1711
    %v1713 = vtanh.pop %v1705
    %v1714 = vxor.u32 %v1705, 2147483648
    %v1715 = vmul.f32 %v1714, 1.442695
    %v1716 = vpow.pop %v1715
    %v1717 = vadd.f32 %v1716, 1.0
    %v1718 = vrcp.pop %v1717
    %v1719 = vmul.f32 1.0, %v1718
    %v1720 = vmul.f32 %v1712, %v1499
    %v1721 = vmul.f32 %v1712, %v1713
    %1723 = vrot.lane.b32.xlu0 %v1721, 64
    %v1724 = vpop.permute.xlu0 %1723
    %v1726 = vadd.f32 %v1720, %v1724
    %v1727 = vtanh.pop %v1726
    %v1728 = vmul.f32 %v1719, %v1727
    %1730 = vrot.lane.b32.xlu0 %v1728, 64
    %v1731 = vpop.permute.xlu0 %1730
    %1733 = vst.msk [vmem:[#allocation2 + $0x6] sm:$0x1] %vm370, %v1731
    %s1734 = scalar_lea.vmem [#allocation4], 7
    %v1735 = vld [vmem:[%s1734] ss:$8 sm:$0x3]
    %v1737 = vsel %vm134, %v1634, 0
    %1739 = vmatprep.subr.mxu0 %v85
    %1740 = vmatpush1.msra.mxu0 %v84
    %1741 = vmatprep.subr.mxu0 %v87
    %1742 = vmatpush1.msra.mxu0 %v86
    %1743 = vmatprep.subr.mxu0 %v89
    %1744 = vmatpush1.msra.mxu0 %v88
    %1745 = vmatprep.subr.mxu0 %v91
    %1746 = vmatpush1.msra.mxu0 %v90
    %1747 = vmatprep.subr.mxu0 %v93
    %1748 = vmatpush1.msra.mxu0 %v92
    %1749 = vmatprep.subr.mxu0 %v95
    %1750 = vmatpush1.msra.mxu0 %v94
    %1751 = vmatprep.subr.mxu0 %v97
    %1752 = vmatpush1.msra.mxu0 %v96
    %1753 = vmatprep.subr.mxu0 %v99
    %1754 = vmatpush1.msra.mxu0 %v98
    %1755 = vmatprep.subr.mxu0 0.0
    %1756 = vmatpush1.msra.mxu0 0.0
    %1757 = vmatprep.subr.mxu0 0.0
    %1758 = vmatpush1.msra.mxu0 0.0
    %1759 = vmatprep.subr.mxu0 0.0
    %1760 = vmatpush1.msra.mxu0 0.0
    %1761 = vmatprep.subr.mxu0 0.0
    %1762 = vmatpush1.msra.mxu0 0.0
    %1763 = vmatprep.subr.mxu0 0.0
    %1764 = vmatpush1.msra.mxu0 0.0
    %1765 = vmatprep.subr.mxu0 0.0
    %1766 = vmatpush1.msra.mxu0 0.0
    %1767 = vmatprep.subr.mxu0 0.0
    %1768 = vmatpush1.msra.mxu0 0.0
    %1769 = vmatprep.subr.mxu0 0.0
    %1770 = vmatpush1.msra.mxu0 0.0
    %1771 = vmatprep.subr.mxu0 0.0
    %1772 = vmatpush1.msra.mxu0 0.0
    %1773 = vmatprep.subr.mxu0 0.0
    %1774 = vmatpush1.msra.mxu0 0.0
    %1775 = vmatprep.subr.mxu0 0.0
    %1776 = vmatpush1.msra.mxu0 0.0
    %1777 = vmatprep.subr.mxu0 0.0
    %1778 = vmatpush1.msra.mxu0 0.0
    %1779 = vmatprep.subr.mxu0 0.0
    %1780 = vmatpush1.msra.mxu0 0.0
    %1781 = vmatprep.subr.mxu0 0.0
    %1782 = vmatpush1.msra.mxu0 0.0
    %1783 = vmatprep.subr.mxu0 0.0
    %1784 = vmatpush1.msra.mxu0 0.0
    %1785 = vmatprep.subr.mxu0 0.0
    %1786 = vmatpush1.msra.mxu0 0.0
    %1787 = vmatprep.subr.mxu0 0.0
    %1788 = vmatpush1.msra.mxu0 0.0
    %1789 = vmatprep.subr.mxu0 0.0
    %1790 = vmatpush1.msra.mxu0 0.0
    %1791 = vmatprep.subr.mxu0 0.0
    %1792 = vmatpush1.msra.mxu0 0.0
    %1793 = vmatprep.subr.mxu0 0.0
    %1794 = vmatpush1.msra.mxu0 0.0
    %1795 = vmatprep.subr.mxu0 0.0
    %1796 = vmatpush1.msra.mxu0 0.0
    %1797 = vmatprep.subr.mxu0 0.0
    %1798 = vmatpush1.msra.mxu0 0.0
    %1799 = vmatprep.subr.mxu0 0.0
    %1800 = vmatpush1.msra.mxu0 0.0
    %1801 = vmatprep.subr.mxu0 0.0
    %1802 = vmatpush1.msra.mxu0 0.0
    %1803 = vmatprep.mubr.f32.mxu0 0.0
    %1804 = vmatmul.mubr.f32.gmra.mrb[0].mxu0 %v1737
    %v1805 = vpop.f32.mrb[0].mxu0
    %v1806 = vadd.f32 0.0, %v1805
    %v1807 = vpop.f32.mrb[0].mxu0
    %v1808 = vadd.f32 0.0, %v1807
    %1809 = vdwg.mxu0
    %v1812 = vcombine.low %v1806, %v1808
    %v1814 = vunpack.c.l.s4 1966171168
    %v1815 = vunpack.c.0.s8 %v1814
    %v1816 = vlaneseq
    %v1817 = vshrl.u32 %v1816, 7
    %v1818 = vsub.s32 %v1815, %v1817
    %v1819 = vrot.slane %v1812, %v1818
    %v1821 = vunpack.c.l.s4 1966171168
    %v1822 = vunpack.c.0.s8 %v1821
    %v1823 = vlaneseq
    %v1824 = vshrl.u32 %v1823, 7
    %v1825 = vsub.s32 %v1822, %v1824
    %v1826 = vrot.slane %v1819, %v1825
    %v1828 = vadd.f32 %v1735, %v1826
    %v1829 = vxor.u32 %v1828, 2147483648
    %v1830 = vmul.f32 %v1829, 1.442695
    %v1831 = vpow.pop %v1830
    %v1832 = vadd.f32 %v1831, 1.0
    %v1833 = vrcp.pop %v1832
    %v1834 = vmul.f32 1.0, %v1833
    %v1836 = vrot.slane %v1828, 1
    %v1838 = vtanh.pop %v1836
    %1839 = vrot.lane.b32.xlu0 %v1828, 64
    %v1840 = vpop.permute.xlu0 %1839
    %v1841 = vrot.slane %v1840, 1
    %v1843 = vxor.u32 %v1841, 2147483648
    %v1844 = vmul.f32 %v1843, 1.442695
    %v1845 = vpow.pop %v1844
    %v1846 = vadd.f32 %v1845, 1.0
    %v1847 = vrcp.pop %v1846
    %v1848 = vmul.f32 1.0, %v1847
    %v1849 = vmul.f32 %v1834, %v1628
    %v1850 = vmul.f32 %v1834, %v1838
    %1852 = vrot.lane.b32.xlu0 %v1850, 64
    %v1853 = vpop.permute.xlu0 %1852
    %v1855 = vadd.f32 %v1849, %v1853
    %v1856 = vtanh.pop %v1855
    %1858 = vrot.lane.b32.xlu0 %v1856, 64
    %v1859 = vpop.permute.xlu0 %1858
    %v1861 = vmul.f32 %v1848, %v1859
    %v1862 = vsel %vm134, %v1861, %v1728
    %1863 = vmatprep.subr.mxu0 %v101
    %1864 = vmatpush1.msra.mxu0 %v100
    %1865 = vmatprep.subr.mxu0 %v103
    %1866 = vmatpush1.msra.mxu0 %v102
    %1867 = vmatprep.subr.mxu0 %v105
    %1868 = vmatpush1.msra.mxu0 %v104
    %1869 = vmatprep.subr.mxu0 %v107
    %1870 = vmatpush1.msra.mxu0 %v106
    %1871 = vmatprep.subr.mxu0 %v109
    %1872 = vmatpush1.msra.mxu0 %v108
    %1873 = vmatprep.subr.mxu0 %v111
    %1874 = vmatpush1.msra.mxu0 %v110
    %1875 = vmatprep.subr.mxu0 %v113
    %1876 = vmatpush1.msra.mxu0 %v112
    %1877 = vmatprep.subr.mxu0 %v115
    %1878 = vmatpush1.msra.mxu0 %v114
    %1879 = vmatprep.subr.mxu0 %v117
    %1880 = vmatpush1.msra.mxu0 %v116
    %1881 = vmatprep.subr.mxu0 %v119
    %1882 = vmatpush1.msra.mxu0 %v118
    %1883 = vmatprep.subr.mxu0 %v121
    %1884 = vmatpush1.msra.mxu0 %v120
    %1885 = vmatprep.subr.mxu0 %v123
    %1886 = vmatpush1.msra.mxu0 %v122
    %1887 = vmatprep.subr.mxu0 %v125
    %1888 = vmatpush1.msra.mxu0 %v124
    %1889 = vmatprep.subr.mxu0 %v127
    %1890 = vmatpush1.msra.mxu0 %v126
    %1891 = vmatprep.subr.mxu0 %v129
    %1892 = vmatpush1.msra.mxu0 %v128
    %1893 = vmatprep.subr.mxu0 %v131
    %1894 = vmatpush1.msra.mxu0 %v130
    %1895 = vmatprep.subr.mxu0 0.0
    %1896 = vmatpush1.msra.mxu0 0.0
    %1897 = vmatprep.subr.mxu0 0.0
    %1898 = vmatpush1.msra.mxu0 0.0
    %1899 = vmatprep.subr.mxu0 0.0
    %1900 = vmatpush1.msra.mxu0 0.0
    %1901 = vmatprep.subr.mxu0 0.0
    %1902 = vmatpush1.msra.mxu0 0.0
    %1903 = vmatprep.subr.mxu0 0.0
    %1904 = vmatpush1.msra.mxu0 0.0
    %1905 = vmatprep.subr.mxu0 0.0
    %1906 = vmatpush1.msra.mxu0 0.0
    %1907 = vmatprep.subr.mxu0 0.0
    %1908 = vmatpush1.msra.mxu0 0.0
    %1909 = vmatprep.subr.mxu0 0.0
    %1910 = vmatpush1.msra.mxu0 0.0
    %1911 = vmatprep.subr.mxu0 0.0
    %1912 = vmatpush1.msra.mxu0 0.0
    %1913 = vmatprep.subr.mxu0 0.0
    %1914 = vmatpush1.msra.mxu0 0.0
    %1915 = vmatprep.subr.mxu0 0.0
    %1916 = vmatpush1.msra.mxu0 0.0
    %1917 = vmatprep.subr.mxu0 0.0
    %1918 = vmatpush1.msra.mxu0 0.0
    %1919 = vmatprep.subr.mxu0 0.0
    %1920 = vmatpush1.msra.mxu0 0.0
    %1921 = vmatprep.subr.mxu0 0.0
    %1922 = vmatpush1.msra.mxu0 0.0
    %1923 = vmatprep.subr.mxu0 0.0
    %1924 = vmatpush1.msra.mxu0 0.0
    %1925 = vmatprep.subr.mxu0 0.0
    %1926 = vmatpush1.msra.mxu0 0.0
    %1927 = vmatprep.mubr.f32.mxu0 0.0
    %1928 = vmatmul.mubr.f32.gmra.mrb[0].mxu0 %v1862
    %v1929 = vpop.f32.mrb[0].mxu0
    %v1930 = vadd.f32 %v266, %v1929
    %v1931 = vpop.f32.mrb[0].mxu0
    %v1932 = vadd.f32 %v270, %v1931
    %1933 = vdwg.mxu0
    %v1934 = vxor.u32 %v1930, 2147483648
    %v1935 = vmul.f32 %v1934, 1.442695
    %v1936 = vpow.pop %v1935
    %v1937 = vadd.f32 %v1936, 1.0
    %v1938 = vrcp.pop %v1937
    %v1939 = vmul.f32 1.0, %v1938
    %v1940 = vtanh.pop %v1932
    %v1941 = vxor.u32 %v1932, 2147483648
    %v1942 = vmul.f32 %v1941, 1.442695
    %v1943 = vpow.pop %v1942
    %v1944 = vadd.f32 %v1943, 1.0
    %v1945 = vrcp.pop %v1944
    %v1946 = vmul.f32 1.0, %v1945
    %v1947 = vmul.f32 %v1939, %v1726
    %v1948 = vmul.f32 %v1939, %v1940
    %1950 = vrot.lane.b32.xlu0 %v1948, 64
    %v1951 = vpop.permute.xlu0 %1950
    %v1953 = vadd.f32 %v1947, %v1951
    %v1954 = vtanh.pop %v1953
    %v1955 = vmul.f32 %v1946, %v1954
    %1957 = vrot.lane.b32.xlu0 %v1955, 64
    %v1958 = vpop.permute.xlu0 %1957
    %1960 = vst.msk [vmem:[#allocation2 + $0x7] sm:$0x1] %vm370, %v1958
    %v1961 = vld [vmem:[#allocation2] sm:$0xff]
    %v1962 = vmax.f32 %v1961, 0.0
    %v1963 = vld [vmem:[#allocation9] sm:$0xff]
    %v1964 = vld [vmem:[#allocation9 + $0x8] sm:$0xff]
    %v1965 = vld [vmem:[#allocation9 + $0x10] sm:$0xff]
    %v1966 = vld [vmem:[#allocation9 + $0x18] sm:$0xff]
    %v1967 = vld [vmem:[#allocation9 + $0x20] sm:$0xff]
    %v1968 = vld [vmem:[#allocation9 + $0x28] sm:$0xff]
    %v1969 = vld [vmem:[#allocation9 + $0x30] sm:$0xff]
    %v1970 = vld [vmem:[#allocation9 + $0x38] sm:$0xff]
    %v1971 = vld [vmem:[%s5] sm:$0x1]
    %v1973 = vlaneseq
    %v1974 = vshrl.u32 %v1973, 7
    %v1975 = vsub.s32 0, %v1974
    %v1976 = vrot.slane %v1971, %v1975
    %v1979 = vsel %vm134, %v1962, 0
    %1981 = vmatprep.subr.mxu0 0.0
    %1982 = vmatpush1.msra.mxu0 %v1963
    %1983 = vmatprep.subr.mxu0 0.0
    %1984 = vmatpush1.msra.mxu0 %v1964
    %1985 = vmatprep.subr.mxu0 0.0
    %1986 = vmatpush1.msra.mxu0 %v1965
    %1987 = vmatprep.subr.mxu0 0.0
    %1988 = vmatpush1.msra.mxu0 %v1966
    %1989 = vmatprep.subr.mxu0 0.0
    %1990 = vmatpush1.msra.mxu0 %v1967
    %1991 = vmatprep.subr.mxu0 0.0
    %1992 = vmatpush1.msra.mxu0 %v1968
    %1993 = vmatprep.subr.mxu0 0.0
    %1994 = vmatpush1.msra.mxu0 %v1969
    %1995 = vmatprep.subr.mxu0 0.0
    %1996 = vmatpush1.msra.mxu0 %v1970
    %1997 = vmatprep.subr.mxu0 0.0
    %1998 = vmatpush1.msra.mxu0 0.0
    %1999 = vmatprep.subr.mxu0 0.0
    %2000 = vmatpush1.msra.mxu0 0.0
    %2001 = vmatprep.subr.mxu0 0.0
    %2002 = vmatpush1.msra.mxu0 0.0
    %2003 = vmatprep.subr.mxu0 0.0
    %2004 = vmatpush1.msra.mxu0 0.0
    %2005 = vmatprep.subr.mxu0 0.0
    %2006 = vmatpush1.msra.mxu0 0.0
    %2007 = vmatprep.subr.mxu0 0.0
    %2008 = vmatpush1.msra.mxu0 0.0
    %2009 = vmatprep.subr.mxu0 0.0
    %2010 = vmatpush1.msra.mxu0 0.0
    %2011 = vmatprep.subr.mxu0 0.0
    %2012 = vmatpush1.msra.mxu0 0.0
    %2013 = vmatprep.subr.mxu0 0.0
    %2014 = vmatpush1.msra.mxu0 0.0
    %2015 = vmatprep.subr.mxu0 0.0
    %2016 = vmatpush1.msra.mxu0 0.0
    %2017 = vmatprep.subr.mxu0 0.0
    %2018 = vmatpush1.msra.mxu0 0.0
    %2019 = vmatprep.subr.mxu0 0.0
    %2020 = vmatpush1.msra.mxu0 0.0
    %2021 = vmatprep.subr.mxu0 0.0
    %2022 = vmatpush1.msra.mxu0 0.0
    %2023 = vmatprep.subr.mxu0 0.0
    %2024 = vmatpush1.msra.mxu0 0.0
    %2025 = vmatprep.subr.mxu0 0.0
    %2026 = vmatpush1.msra.mxu0 0.0
    %2027 = vmatprep.subr.mxu0 0.0
    %2028 = vmatpush1.msra.mxu0 0.0
    %2029 = vmatprep.subr.mxu0 0.0
    %2030 = vmatpush1.msra.mxu0 0.0
    %2031 = vmatprep.subr.mxu0 0.0
    %2032 = vmatpush1.msra.mxu0 0.0
    %2033 = vmatprep.subr.mxu0 0.0
    %2034 = vmatpush1.msra.mxu0 0.0
    %2035 = vmatprep.subr.mxu0 0.0
    %2036 = vmatpush1.msra.mxu0 0.0
    %2037 = vmatprep.subr.mxu0 0.0
    %2038 = vmatpush1.msra.mxu0 0.0
    %2039 = vmatprep.subr.mxu0 0.0
    %2040 = vmatpush1.msra.mxu0 0.0
    %2041 = vmatprep.subr.mxu0 0.0
    %2042 = vmatpush1.msra.mxu0 0.0
    %2043 = vmatprep.subr.mxu0 0.0
    %2044 = vmatpush1.msra.mxu0 0.0
    %2045 = vmatprep.mubr.f32.mxu0 0.0
    %2046 = vmatmul.mubr.f32.gmra.mrb[0].mxu0 %v1979
    %v2047 = vpop.f32.mrb[0].mxu0
    %v2048 = vadd.f32 %v1976, %v2047
    %v2049 = vpop.f32.mrb[0].mxu0
    %2050 = vdwg.mxu0
    %v2051 = vmax.f32 %v2048, 0.0
    %v2052 = vld [vmem:[%s6] sm:$0x1]
    %v2054 = vlaneseq
    %v2055 = vshrl.u32 %v2054, 7
    %v2056 = vsub.s32 0, %v2055
    %v2057 = vrot.slane %v2052, %v2056
    %v2059 = vmul.f32 %v2051, %v2057
    %2060 = vadd.xlane.f32.xlu0 %v2059
    %v2061 = vpop.xlane.xlu0 %2060
    %v2062 = vld [vmem:[#allocation3] sm:$0x1]
    %v2064 = vlaneseq
    %v2065 = vshrl.u32 %v2064, 7
    %v2066 = vsub.s32 0, %v2065
    %v2067 = vrot.slane %v2062, %v2066
    %v2069 = vadd.f32 %v2061, %v2067
    %vm2070 = vcmask 7168
    %2071 = vst.msk [vmem:[%s8] sm:$0xff] %vm2070, %v2069
    // Predicated region
    $region50: #{tpu_custom_call.1} parent=1 // pred_check
      _
    $region51: #{tpu_custom_call.1} parent=1 // pred_check_branch
      %2073 = sbr.rel (0) target = $region53
    $region52: #{tpu_custom_call.1} parent=1 // pred_region
      _
    $region53: #{tpu_custom_call.1} parent=1 // pred_fallthru
      _
    // Predicated region
    $region54: #{tpu_custom_call.1} parent=1 // pred_check
      _
    $region55: #{tpu_custom_call.1} parent=1 // pred_check_branch
      %2075 = sbr.rel (0) target = $region57
    $region56: #{tpu_custom_call.1} parent=1 // pred_region
      _
    $region57: #{tpu_custom_call.1} parent=1 // pred_fallthru
      _
    %2076 = vsyncpa [#allocation5], 1
    %2077 = vsyncpa [#allocation7], 1
    %2078 = vsyncpa [#allocation10], 1

</llo_original>
